<compile_context>
chip_gen: v7x
topology: tpu7x:2x2x1
jax: 0.10.0
libtpu: 0.0.40
codegen_flags: <defaults>
</compile_context>

<pallas_src>
import jax
import jax.numpy as jnp
from jax import lax
from jax.experimental import pallas as pl
from jax.experimental.pallas import tpu as pltpu

EPS = 1e-5


def _fused_add_conv_bn_kernel(x1_ref, x2_ref, w_ref, gamma_ref, beta_ref, o_ref):
    # x1_ref, x2_ref : [Cin, P]    f32   (free reshape of NCHW, no transpose)
    # w_ref          : [Cin, Cout] bf16  (canonical MXU RHS, one-time prep)
    # gamma_ref/beta : [1, Cout]   f32
    # o_ref          : [Cout, P]   f32   (NCHW channel-major; wrapper reshape is free)
    xs = (x1_ref[...] + x2_ref[...]).astype(jnp.bfloat16)          # residual add

    # 1x1 conv == matmul over channels; contract Cin = axis 0 of xs, axis 0 of w.
    y = lax.dot_general(
        xs, w_ref[...],
        dimension_numbers=(((0,), (0,)), ((), ())),
        preferred_element_type=jnp.float32,
    )                                                               # [P, Cout] f32

    # Training-mode BatchNorm: per-channel stats over P = N*H*W.
    # Two-pass variance (mean, then E[(y-mean)^2]) — y is VMEM-resident, so the
    # extra pass is cheap and avoids the E[y^2]-E[y]^2 cancellation issue.
    inv_p = 1.0 / y.shape[0]
    mean = jnp.sum(y, axis=0, keepdims=True) * inv_p                # [1, Cout]
    d = y - mean                                                    # [P, Cout]
    var = jnp.sum(d * d, axis=0, keepdims=True) * inv_p             # [1, Cout]
    scale = gamma_ref[...] * lax.rsqrt(var + EPS)                   # [1, Cout]
    z = d * scale + beta_ref[...]                                   # [P, Cout]

    # Fold the NCHW layout change into the epilogue (XLU transpose of a
    # [49,1392] f32 tile — tens-to-hundreds of ns, replaces a separate XLA op).
    o_ref[...] = z.T                                                # [Cout, P]
    # TODO(synk): BatchNorm2d's running_mean/running_var momentum update
    # (track_running_stats) is module state, not part of the returned tensor,
    # and is intentionally not emitted by this kernel.


def prepare_conv_weight(conv_w):
    """One-time parameter prep: [Cout, Cin, 1, 1] f32 -> [Cin, Cout] bf16.

    Canonical MXU RHS orientation + lane-dense 2784 B contiguous rows; done
    once outside the per-call path so no per-call convert/transpose op runs.
    """
    Cout, Cin = conv_w.shape[:2]
    return jnp.asarray(conv_w.reshape(Cout, Cin).T, dtype=jnp.bfloat16)


@jax.jit
def fused_add_conv_bn(x352, x337, w_t_bf16, gamma, beta):
    """x352, x337: [1, Cin, H, W] f32; w_t_bf16: [Cin, Cout] bf16 (prepped);
    gamma/beta: [Cout] f32. Returns [1, Cout, H, W] f32."""
    N, Cin, H, W = x352.shape
    assert N == 1  # module spec is batch 1; the free reshape below relies on it
    Cout = w_t_bf16.shape[1]
    P = N * H * W

    # Free (metadata-only) reshapes feeding the pallas_call — no transposes.
    x1 = x352.reshape(Cin, P)
    x2 = x337.reshape(Cin, P)
    g = gamma.reshape(1, Cout)
    b = beta.reshape(1, Cout)

    flops = 2 * P * Cin * Cout + 8 * P * Cout               # matmul + BN epilogue
    bytes_accessed = (2 * Cin * P * 4                        # x1, x2 f32
                      + Cin * Cout * 2                       # weight bf16
                      + 2 * Cout * 4                         # gamma, beta
                      + Cout * P * 4)                        # output f32

    vmem = pl.BlockSpec(memory_space=pltpu.MemorySpace.VMEM)
    out_cp = pl.pallas_call(
        _fused_add_conv_bn_kernel,
        out_shape=jax.ShapeDtypeStruct((Cout, P), jnp.float32),
        in_specs=[vmem, vmem, vmem, vmem, vmem],
        out_specs=vmem,
        cost_estimate=pl.CostEstimate(
            flops=flops, bytes_accessed=bytes_accessed, transcendentals=Cout),
    )(x1, x2, w_t_bf16, g, b)

    # [Cout, P] -> NCHW [1, Cout, H, W]: free reshape, no transpose kernel.
    return out_cp.reshape(1, Cout, H, W)


def reference(x352, x337, conv_w, gamma, beta):
    """Pure-JAX f32 reference of the PyTorch forward (training-mode BN)."""
    xs = x352 + x337
    Cout, Cin = conv_w.shape[:2]
    y = jnp.einsum("nchw,oc->nohw", xs, conv_w.reshape(Cout, Cin))
    mean = jnp.mean(y, axis=(0, 2, 3), keepdims=True)
    var = jnp.mean((y - mean) ** 2, axis=(0, 2, 3), keepdims=True)
    return (y - mean) / jnp.sqrt(var + EPS) * gamma.reshape(1, Cout, 1, 1) \
        + beta.reshape(1, Cout, 1, 1)


if __name__ == "__main__":
    N, Cin, H, W = 1, 232, 7, 7
    Cout = 1392

    key = jax.random.PRNGKey(0)
    k1, k2, k3, k4, k5 = jax.random.split(key, 5)

    x352 = jax.random.normal(k1, (N, Cin, H, W), dtype=jnp.float32)
    x337 = jax.random.normal(k2, (N, Cin, H, W), dtype=jnp.float32)
    # Deterministic parameter init (shapes from Conv2d(232,1392,1,1) & BN(1392))
    conv_w = jax.random.normal(k3, (Cout, Cin, 1, 1), dtype=jnp.float32) * (1.0 / Cin) ** 0.5
    gamma = 1.0 + 0.1 * jax.random.normal(k4, (Cout,), dtype=jnp.float32)
    beta = 0.1 * jax.random.normal(k5, (Cout,), dtype=jnp.float32)

    # One-time parameter prep (outside the per-call jitted path).
    w_prepped = jax.block_until_ready(prepare_conv_weight(conv_w))

    out = jax.block_until_ready(fused_add_conv_bn(x352, x337, w_prepped, gamma, beta))
    ref = reference(x352, x337, conv_w, gamma, beta)

    assert out.shape == (N, Cout, H, W)
    # bf16 weight/activation feed into the MXU (f32 accumulate), so a few e-3
    # of deviation vs the pure-f32 reference is expected.
    assert jnp.allclose(out, ref, atol=3e-2, rtol=3e-2), \
        float(jnp.max(jnp.abs(out - ref)))

    print("KERNEL_OK")
</pallas_src>

<mosaic_0001>
module attributes {stable_mosaic.version = 11 : i64} {
  func.func @_fused_add_conv_bn_kernel(%arg0: memref<232x49xf32, #tpu.memory_space<vmem>>, %arg1: memref<232x49xf32, #tpu.memory_space<vmem>>, %arg2: memref<232x1392xbf16, #tpu.memory_space<vmem>>, %arg3: memref<1x1392xf32, #tpu.memory_space<vmem>>, %arg4: memref<1x1392xf32, #tpu.memory_space<vmem>>, %arg5: memref<1392x49xf32, #tpu.memory_space<vmem>>) attributes {dimension_semantics = [], scalar_prefetch = 0 : i64, scratch_operands = 0 : i64, tpu.core_type = #tpu.core_type<tc>} {
    %c0 = arith.constant 0 : index
    %c0_0 = arith.constant 0 : index
    %0 = vector.load %arg0[%c0, %c0_0] : memref<232x49xf32, #tpu.memory_space<vmem>>, vector<232x49xf32>
    %c0_1 = arith.constant 0 : index
    %c0_2 = arith.constant 0 : index
    %1 = vector.load %arg1[%c0_1, %c0_2] : memref<232x49xf32, #tpu.memory_space<vmem>>, vector<232x49xf32>
    %2 = arith.addf %0, %1 : vector<232x49xf32>
    %3 = arith.truncf %2 : vector<232x49xf32> to vector<232x49xbf16>
    %c0_3 = arith.constant 0 : index
    %c0_4 = arith.constant 0 : index
    %4 = vector.load %arg2[%c0_3, %c0_4] : memref<232x1392xbf16, #tpu.memory_space<vmem>>, vector<232x1392xbf16>
    %cst = arith.constant dense<0.000000e+00> : vector<49x1392xf32>
    %5 = tpu.matmul %3, %4, %cst {dimension_numbers = #tpu.dot_dimension_numbers<[0], [0], [1], [1], [0, 1, 1, 1], [], []>} : vector<232x49xbf16>, vector<232x1392xbf16>, vector<49x1392xf32> -> vector<49x1392xf32>
    %cst_5 = arith.constant dense<0.000000e+00> : vector<1392xf32>
    %6 = vector.multi_reduction <add>, %5, %cst_5 [0] : vector<49x1392xf32> to vector<1392xf32>
    %7 = vector.shape_cast %6 : vector<1392xf32> to vector<1x1392xf32>
    %cst_6 = arith.constant 0.0204081628 : f32
    %8 = vector.broadcast %cst_6 : f32 to vector<1x1392xf32>
    %9 = arith.mulf %7, %8 : vector<1x1392xf32>
    %10 = vector.broadcast %9 : vector<1x1392xf32> to vector<49x1392xf32>
    %11 = arith.subf %5, %10 : vector<49x1392xf32>
    %12 = arith.mulf %11, %11 : vector<49x1392xf32>
    %cst_7 = arith.constant dense<0.000000e+00> : vector<1392xf32>
    %13 = vector.multi_reduction <add>, %12, %cst_7 [0] : vector<49x1392xf32> to vector<1392xf32>
    %14 = vector.shape_cast %13 : vector<1392xf32> to vector<1x1392xf32>
    %cst_8 = arith.constant 0.0204081628 : f32
    %15 = vector.broadcast %cst_8 : f32 to vector<1x1392xf32>
    %16 = arith.mulf %14, %15 : vector<1x1392xf32>
    %c0_9 = arith.constant 0 : index
    %c0_10 = arith.constant 0 : index
    %17 = vector.load %arg3[%c0_9, %c0_10] : memref<1x1392xf32, #tpu.memory_space<vmem>>, vector<1x1392xf32>
    %cst_11 = arith.constant 9.99999974E-6 : f32
    %18 = vector.broadcast %cst_11 : f32 to vector<1x1392xf32>
    %19 = arith.addf %16, %18 : vector<1x1392xf32>
    %20 = math.rsqrt %19 : vector<1x1392xf32>
    %21 = arith.mulf %17, %20 : vector<1x1392xf32>
    %22 = vector.broadcast %21 : vector<1x1392xf32> to vector<49x1392xf32>
    %23 = arith.mulf %11, %22 : vector<49x1392xf32>
    %c0_12 = arith.constant 0 : index
    %c0_13 = arith.constant 0 : index
    %24 = vector.load %arg4[%c0_12, %c0_13] : memref<1x1392xf32, #tpu.memory_space<vmem>>, vector<1x1392xf32>
    %25 = vector.broadcast %24 : vector<1x1392xf32> to vector<49x1392xf32>
    %26 = arith.addf %23, %25 : vector<49x1392xf32>
    %27 = tpu.transpose %26, [1, 0] : vector<49x1392xf32> -> vector<1392x49xf32>
    %c0_14 = arith.constant 0 : index
    %c0_15 = arith.constant 0 : index
    %28 = vector.load %arg5[%c0_14, %c0_15] : memref<1392x49xf32, #tpu.memory_space<vmem>>, vector<1392x49xf32>
    tpu.vector_store %arg5[%c0_14, %c0_15], %27 {strides = array<i32>} : memref<1392x49xf32, #tpu.memory_space<vmem>>, vector<1392x49xf32>,
    return
  }
}

</mosaic_0001>

<llo_original>
// kernel: fused_add_conv_bn.1
$region0: #{fused_add_conv_bn.1}
  #allocation0 [shape = 'u32[]', space=smem, size = 0x4, offset = 0x4, fixed_abs, tag = 'smem constant byte address 0x4 - core index']
  #allocation1 [shape = 'u32[144,128]{1,0:T(1,128)}', space=vmem, size = 0x12000, scoped, tag = 'internal scratch']
  %s0 = inlined_call_operand.vmem [shape: f32[232,49], index: 0, kind: input, shape index: {}]
  %s1 = inlined_call_operand.vmem [shape: f32[232,49], index: 1, kind: input, shape index: {}]
  %s2 = inlined_call_operand.vmem [shape: bf16[232,1392], index: 2, kind: input, shape index: {}]
  %s3 = inlined_call_operand.vmem [shape: f32[1,1392], index: 3, kind: input, shape index: {}]
  %s4 = inlined_call_operand.vmem [shape: f32[1,1392], index: 4, kind: input, shape index: {}]
  %s5 = inlined_call_operand.vmem [shape: f32[1392,49], index: 5, kind: output, shape index: {}]
  %s6 = sld [smem:[#allocation0]]
  $region30: #{fused_add_conv_bn.1} parent=0
    _
  %s8 = ssub.s32 1, %s6
  %s9 = scalar_select 0, %s8, %s6
  // Predicated region
  $region2: #{fused_add_conv_bn.1} parent=0 // pred_check
    _
  $region3: #{fused_add_conv_bn.1} parent=0 // pred_check_branch
    %11 = sbr.rel (0) target = $region5
  $region4: #{fused_add_conv_bn.1} parent=0 // pred_region
    _
  $region5: #{fused_add_conv_bn.1} parent=0 // pred_fallthru
    _
  // Predicated region
  $region6: #{fused_add_conv_bn.1} parent=0 // pred_check
    _
  $region7: #{fused_add_conv_bn.1} parent=0 // pred_check_branch
    %13 = sbr.rel (0) target = $region9
  $region8: #{fused_add_conv_bn.1} parent=0 // pred_region
    _
  $region9: #{fused_add_conv_bn.1} parent=0 // pred_fallthru
    _
  // Predicated region
  $region10: #{fused_add_conv_bn.1} parent=0 // pred_check
    _
  $region11: #{fused_add_conv_bn.1} parent=0 // pred_check_branch
    %15 = sbr.rel (0) target = $region13
  $region12: #{fused_add_conv_bn.1} parent=0 // pred_region
    _
  $region13: #{fused_add_conv_bn.1} parent=0 // pred_fallthru
    _
  // Predicated region
  $region14: #{fused_add_conv_bn.1} parent=0 // pred_check
    _
  $region15: #{fused_add_conv_bn.1} parent=0 // pred_check_branch
    %17 = sbr.rel (0) target = $region17
  $region16: #{fused_add_conv_bn.1} parent=0 // pred_region
    _
  $region17: #{fused_add_conv_bn.1} parent=0 // pred_fallthru
    _
  // Predicated region
  $region18: #{fused_add_conv_bn.1} parent=0 // pred_check
    _
  $region19: #{fused_add_conv_bn.1} parent=0 // pred_check_branch
    %19 = sbr.rel (0) target = $region21
  $region20: #{fused_add_conv_bn.1} parent=0 // pred_region
    _
  $region21: #{fused_add_conv_bn.1} parent=0 // pred_fallthru
    _
  %v21 = vld [vmem:[%s0] sm:$0xff]
  %v22 = vld [vmem:[%s0 + $0x8] sm:$0xff]
  %v23 = vld [vmem:[%s0 + $0x10] sm:$0xff]
  %v24 = vld [vmem:[%s0 + $0x18] sm:$0xff]
  %v25 = vld [vmem:[%s0 + $0x20] sm:$0xff]
  %v26 = vld [vmem:[%s0 + $0x28] sm:$0xff]
  %v27 = vld [vmem:[%s0 + $0x30] sm:$0xff]
  %v28 = vld [vmem:[%s0 + $0x38] sm:$0xff]
  %v29 = vld [vmem:[%s0 + $0x40] sm:$0xff]
  %v30 = vld [vmem:[%s0 + $0x48] sm:$0xff]
  %v31 = vld [vmem:[%s0 + $0x50] sm:$0xff]
  %v32 = vld [vmem:[%s0 + $0x58] sm:$0xff]
  %v33 = vld [vmem:[%s0 + $0x60] sm:$0xff]
  %v34 = vld [vmem:[%s0 + $0x68] sm:$0xff]
  %v35 = vld [vmem:[%s0 + $0x70] sm:$0xff]
  %v36 = vld [vmem:[%s0 + $0x78] sm:$0xff]
  %v37 = vld [vmem:[%s0 + $0x80] sm:$0xff]
  %v38 = vld [vmem:[%s0 + $0x88] sm:$0xff]
  %v39 = vld [vmem:[%s0 + $0x90] sm:$0xff]
  %v40 = vld [vmem:[%s0 + $0x98] sm:$0xff]
  %v41 = vld [vmem:[%s0 + $0xa0] sm:$0xff]
  %v42 = vld [vmem:[%s0 + $0xa8] sm:$0xff]
  %v43 = vld [vmem:[%s0 + $0xb0] sm:$0xff]
  %v44 = vld [vmem:[%s0 + $0xb8] sm:$0xff]
  %v45 = vld [vmem:[%s0 + $0xc0] sm:$0xff]
  %v46 = vld [vmem:[%s0 + $0xc8] sm:$0xff]
  %v47 = vld [vmem:[%s0 + $0xd0] sm:$0xff]
  %v48 = vld [vmem:[%s0 + $0xd8] sm:$0xff]
  %v49 = vld [vmem:[%s0 + $0xe0] sm:$0xff]
  %v50 = vld [vmem:[%s1] sm:$0xff]
  %v51 = vld [vmem:[%s1 + $0x8] sm:$0xff]
  %v52 = vld [vmem:[%s1 + $0x10] sm:$0xff]
  %v53 = vld [vmem:[%s1 + $0x18] sm:$0xff]
  %v54 = vld [vmem:[%s1 + $0x20] sm:$0xff]
  %v55 = vld [vmem:[%s1 + $0x28] sm:$0xff]
  %v56 = vld [vmem:[%s1 + $0x30] sm:$0xff]
  %v57 = vld [vmem:[%s1 + $0x38] sm:$0xff]
  %v58 = vld [vmem:[%s1 + $0x40] sm:$0xff]
  %v59 = vld [vmem:[%s1 + $0x48] sm:$0xff]
  %v60 = vld [vmem:[%s1 + $0x50] sm:$0xff]
  %v61 = vld [vmem:[%s1 + $0x58] sm:$0xff]
  %v62 = vld [vmem:[%s1 + $0x60] sm:$0xff]
  %v63 = vld [vmem:[%s1 + $0x68] sm:$0xff]
  %v64 = vld [vmem:[%s1 + $0x70] sm:$0xff]
  %v65 = vld [vmem:[%s1 + $0x78] sm:$0xff]
  %v66 = vld [vmem:[%s1 + $0x80] sm:$0xff]
  %v67 = vld [vmem:[%s1 + $0x88] sm:$0xff]
  %v68 = vld [vmem:[%s1 + $0x90] sm:$0xff]
  %v69 = vld [vmem:[%s1 + $0x98] sm:$0xff]
  %v70 = vld [vmem:[%s1 + $0xa0] sm:$0xff]
  %v71 = vld [vmem:[%s1 + $0xa8] sm:$0xff]
  %v72 = vld [vmem:[%s1 + $0xb0] sm:$0xff]
  %v73 = vld [vmem:[%s1 + $0xb8] sm:$0xff]
  %v74 = vld [vmem:[%s1 + $0xc0] sm:$0xff]
  %v75 = vld [vmem:[%s1 + $0xc8] sm:$0xff]
  %v76 = vld [vmem:[%s1 + $0xd0] sm:$0xff]
  %v77 = vld [vmem:[%s1 + $0xd8] sm:$0xff]
  %v78 = vld [vmem:[%s1 + $0xe0] sm:$0xff]
  %v79 = vadd.f32 %v21, %v50
  %v80 = vadd.f32 %v22, %v51
  %v81 = vadd.f32 %v23, %v52
  %v82 = vadd.f32 %v24, %v53
  %v83 = vadd.f32 %v25, %v54
  %v84 = vadd.f32 %v26, %v55
  %v85 = vadd.f32 %v27, %v56
  %v86 = vadd.f32 %v28, %v57
  %v87 = vadd.f32 %v29, %v58
  %v88 = vadd.f32 %v30, %v59
  %v89 = vadd.f32 %v31, %v60
  %v90 = vadd.f32 %v32, %v61
  %v91 = vadd.f32 %v33, %v62
  %v92 = vadd.f32 %v34, %v63
  %v93 = vadd.f32 %v35, %v64
  %v94 = vadd.f32 %v36, %v65
  %v95 = vadd.f32 %v37, %v66
  %v96 = vadd.f32 %v38, %v67
  %v97 = vadd.f32 %v39, %v68
  %v98 = vadd.f32 %v40, %v69
  %v99 = vadd.f32 %v41, %v70
  %v100 = vadd.f32 %v42, %v71
  %v101 = vadd.f32 %v43, %v72
  %v102 = vadd.f32 %v44, %v73
  %v103 = vadd.f32 %v45, %v74
  %v104 = vadd.f32 %v46, %v75
  %v105 = vadd.f32 %v47, %v76
  %v106 = vadd.f32 %v48, %v77
  %v107 = vadd.f32 %v49, %v78
  %v108 = vpack.c.bf16 %v80, %v79
  %v109 = vpack.c.bf16 %v82, %v81
  %v110 = vpack.c.bf16 %v84, %v83
  %v111 = vpack.c.bf16 %v86, %v85
  %v112 = vpack.c.bf16 %v88, %v87
  %v113 = vpack.c.bf16 %v90, %v89
  %v114 = vpack.c.bf16 %v92, %v91
  %v115 = vpack.c.bf16 %v94, %v93
  %v116 = vpack.c.bf16 %v96, %v95
  %v117 = vpack.c.bf16 %v98, %v97
  %v118 = vpack.c.bf16 %v100, %v99
  %v119 = vpack.c.bf16 %v102, %v101
  %v120 = vpack.c.bf16 %v104, %v103
  %v121 = vpack.c.bf16 %v106, %v105
  %v122 = vpack.c.bf16 %v107, %v107
  %v123 = vld [vmem:[%s2] sm:$0xff]
  %v124 = vld [vmem:[%s2 + $0x8] sm:$0xff]
  %v125 = vld [vmem:[%s2 + $0x10] sm:$0xff]
  %v126 = vld [vmem:[%s2 + $0x18] sm:$0xff]
  %v127 = vld [vmem:[%s2 + $0x20] sm:$0xff]
  %v128 = vld [vmem:[%s2 + $0x28] sm:$0xf]
  %v129 = vld [vmem:[%s2 + $0x2c] sm:$0xff]
  %v130 = vld [vmem:[%s2 + $0x34] sm:$0xff]
  %v131 = vld [vmem:[%s2 + $0x3c] sm:$0xff]
  %v132 = vld [vmem:[%s2 + $0x44] sm:$0xff]
  %v133 = vld [vmem:[%s2 + $0x4c] sm:$0xff]
  %v134 = vld [vmem:[%s2 + $0x54] sm:$0xf]
  %v135 = vld [vmem:[%s2 + $0x58] sm:$0xff]
  %v136 = vld [vmem:[%s2 + $0x60] sm:$0xff]
  %v137 = vld [vmem:[%s2 + $0x68] sm:$0xff]
  %v138 = vld [vmem:[%s2 + $0x70] sm:$0xff]
  %v139 = vld [vmem:[%s2 + $0x78] sm:$0xff]
  %v140 = vld [vmem:[%s2 + $0x80] sm:$0xf]
  %v141 = vld [vmem:[%s2 + $0x84] sm:$0xff]
  %v142 = vld [vmem:[%s2 + $0x8c] sm:$0xff]
  %v143 = vld [vmem:[%s2 + $0x94] sm:$0xff]
  %v144 = vld [vmem:[%s2 + $0x9c] sm:$0xff]
  %v145 = vld [vmem:[%s2 + $0xa4] sm:$0xff]
  %v146 = vld [vmem:[%s2 + $0xac] sm:$0xf]
  %v147 = vld [vmem:[%s2 + $0xb0] sm:$0xff]
  %v148 = vld [vmem:[%s2 + $0xb8] sm:$0xff]
  %v149 = vld [vmem:[%s2 + $0xc0] sm:$0xff]
  %v150 = vld [vmem:[%s2 + $0xc8] sm:$0xff]
  %v151 = vld [vmem:[%s2 + $0xd0] sm:$0xff]
  %v152 = vld [vmem:[%s2 + $0xd8] sm:$0xf]
  %v153 = vld [vmem:[%s2 + $0xdc] sm:$0xff]
  %v154 = vld [vmem:[%s2 + $0xe4] sm:$0xff]
  %v155 = vld [vmem:[%s2 + $0xec] sm:$0xff]
  %v156 = vld [vmem:[%s2 + $0xf4] sm:$0xff]
  %v157 = vld [vmem:[%s2 + $0xfc] sm:$0xff]
  %v158 = vld [vmem:[%s2 + $0x104] sm:$0xf]
  %v159 = vld [vmem:[%s2 + $0x108] sm:$0xff]
  %v160 = vld [vmem:[%s2 + $0x110] sm:$0xff]
  %v161 = vld [vmem:[%s2 + $0x118] sm:$0xff]
  %v162 = vld [vmem:[%s2 + $0x120] sm:$0xff]
  %v163 = vld [vmem:[%s2 + $0x128] sm:$0xff]
  %v164 = vld [vmem:[%s2 + $0x130] sm:$0xf]
  %v165 = vld [vmem:[%s2 + $0x134] sm:$0xff]
  %v166 = vld [vmem:[%s2 + $0x13c] sm:$0xff]
  %v167 = vld [vmem:[%s2 + $0x144] sm:$0xff]
  %v168 = vld [vmem:[%s2 + $0x14c] sm:$0xff]
  %v169 = vld [vmem:[%s2 + $0x154] sm:$0xff]
  %v170 = vld [vmem:[%s2 + $0x15c] sm:$0xf]
  %v171 = vld [vmem:[%s2 + $0x160] sm:$0xff]
  %v172 = vld [vmem:[%s2 + $0x168] sm:$0xff]
  %v173 = vld [vmem:[%s2 + $0x170] sm:$0xff]
  %v174 = vld [vmem:[%s2 + $0x178] sm:$0xff]
  %v175 = vld [vmem:[%s2 + $0x180] sm:$0xff]
  %v176 = vld [vmem:[%s2 + $0x188] sm:$0xf]
  %v177 = vld [vmem:[%s2 + $0x18c] sm:$0xff]
  %v178 = vld [vmem:[%s2 + $0x194] sm:$0xff]
  %v179 = vld [vmem:[%s2 + $0x19c] sm:$0xff]
  %v180 = vld [vmem:[%s2 + $0x1a4] sm:$0xff]
  %v181 = vld [vmem:[%s2 + $0x1ac] sm:$0xff]
  %v182 = vld [vmem:[%s2 + $0x1b4] sm:$0xf]
  %v183 = vld [vmem:[%s2 + $0x1b8] sm:$0xff]
  %v184 = vld [vmem:[%s2 + $0x1c0] sm:$0xff]
  %v185 = vld [vmem:[%s2 + $0x1c8] sm:$0xff]
  %v186 = vld [vmem:[%s2 + $0x1d0] sm:$0xff]
  %v187 = vld [vmem:[%s2 + $0x1d8] sm:$0xff]
  %v188 = vld [vmem:[%s2 + $0x1e0] sm:$0xf]
  %v189 = vld [vmem:[%s2 + $0x1e4] sm:$0xff]
  %v190 = vld [vmem:[%s2 + $0x1ec] sm:$0xff]
  %v191 = vld [vmem:[%s2 + $0x1f4] sm:$0xff]
  %v192 = vld [vmem:[%s2 + $0x1fc] sm:$0xff]
  %v193 = vld [vmem:[%s2 + $0x204] sm:$0xff]
  %v194 = vld [vmem:[%s2 + $0x20c] sm:$0xf]
  %v195 = vld [vmem:[%s2 + $0x210] sm:$0xff]
  %v196 = vld [vmem:[%s2 + $0x218] sm:$0xff]
  %v197 = vld [vmem:[%s2 + $0x220] sm:$0xff]
  %v198 = vld [vmem:[%s2 + $0x228] sm:$0xff]
  %v199 = vld [vmem:[%s2 + $0x230] sm:$0xff]
  %v200 = vld [vmem:[%s2 + $0x238] sm:$0xf]
  %v201 = vld [vmem:[%s2 + $0x23c] sm:$0xff]
  %v202 = vld [vmem:[%s2 + $0x244] sm:$0xff]
  %v203 = vld [vmem:[%s2 + $0x24c] sm:$0xff]
  %v204 = vld [vmem:[%s2 + $0x254] sm:$0xff]
  %v205 = vld [vmem:[%s2 + $0x25c] sm:$0xff]
  %v206 = vld [vmem:[%s2 + $0x264] sm:$0xf]
  %v207 = vld [vmem:[%s2 + $0x268] sm:$0xff]
  %v208 = vld [vmem:[%s2 + $0x270] sm:$0xff]
  %v209 = vld [vmem:[%s2 + $0x278] sm:$0xff]
  %v210 = vld [vmem:[%s2 + $0x280] sm:$0xff]
  %v211 = vld [vmem:[%s2 + $0x288] sm:$0xff]
  %v212 = vld [vmem:[%s2 + $0x290] sm:$0xf]
  %v213 = vld [vmem:[%s2 + $0x294] sm:$0xff]
  %v214 = vld [vmem:[%s2 + $0x29c] sm:$0xff]
  %v215 = vld [vmem:[%s2 + $0x2a4] sm:$0xff]
  %v216 = vld [vmem:[%s2 + $0x2ac] sm:$0xff]
  %v217 = vld [vmem:[%s2 + $0x2b4] sm:$0xff]
  %v218 = vld [vmem:[%s2 + $0x2bc] sm:$0xf]
  %v219 = vld [vmem:[%s2 + $0x2c0] sm:$0xff]
  %v220 = vld [vmem:[%s2 + $0x2c8] sm:$0xff]
  %v221 = vld [vmem:[%s2 + $0x2d0] sm:$0xff]
  %v222 = vld [vmem:[%s2 + $0x2d8] sm:$0xff]
  %v223 = vld [vmem:[%s2 + $0x2e0] sm:$0xff]
  %v224 = vld [vmem:[%s2 + $0x2e8] sm:$0xf]
  %v225 = vld [vmem:[%s2 + $0x2ec] sm:$0xff]
  %v226 = vld [vmem:[%s2 + $0x2f4] sm:$0xff]
  %v227 = vld [vmem:[%s2 + $0x2fc] sm:$0xff]
  %v228 = vld [vmem:[%s2 + $0x304] sm:$0xff]
  %v229 = vld [vmem:[%s2 + $0x30c] sm:$0xff]
  %v230 = vld [vmem:[%s2 + $0x314] sm:$0xf]
  %v231 = vld [vmem:[%s2 + $0x318] sm:$0xff]
  %v232 = vld [vmem:[%s2 + $0x320] sm:$0xff]
  %v233 = vld [vmem:[%s2 + $0x328] sm:$0xff]
  %v234 = vld [vmem:[%s2 + $0x330] sm:$0xff]
  %v235 = vld [vmem:[%s2 + $0x338] sm:$0xff]
  %v236 = vld [vmem:[%s2 + $0x340] sm:$0xf]
  %v237 = vld [vmem:[%s2 + $0x344] sm:$0xff]
  %v238 = vld [vmem:[%s2 + $0x34c] sm:$0xff]
  %v239 = vld [vmem:[%s2 + $0x354] sm:$0xff]
  %v240 = vld [vmem:[%s2 + $0x35c] sm:$0xff]
  %v241 = vld [vmem:[%s2 + $0x364] sm:$0xff]
  %v242 = vld [vmem:[%s2 + $0x36c] sm:$0xf]
  %v243 = vld [vmem:[%s2 + $0x370] sm:$0xff]
  %v244 = vld [vmem:[%s2 + $0x378] sm:$0xff]
  %v245 = vld [vmem:[%s2 + $0x380] sm:$0xff]
  %v246 = vld [vmem:[%s2 + $0x388] sm:$0xff]
  %v247 = vld [vmem:[%s2 + $0x390] sm:$0xff]
  %v248 = vld [vmem:[%s2 + $0x398] sm:$0xf]
  %v249 = vld [vmem:[%s2 + $0x39c] sm:$0xff]
  %v250 = vld [vmem:[%s2 + $0x3a4] sm:$0xff]
  %v251 = vld [vmem:[%s2 + $0x3ac] sm:$0xff]
  %v252 = vld [vmem:[%s2 + $0x3b4] sm:$0xff]
  %v253 = vld [vmem:[%s2 + $0x3bc] sm:$0xff]
  %v254 = vld [vmem:[%s2 + $0x3c4] sm:$0xf]
  %v255 = vld [vmem:[%s2 + $0x3c8] sm:$0xff]
  %v256 = vld [vmem:[%s2 + $0x3d0] sm:$0xff]
  %v257 = vld [vmem:[%s2 + $0x3d8] sm:$0xff]
  %v258 = vld [vmem:[%s2 + $0x3e0] sm:$0xff]
  %v259 = vld [vmem:[%s2 + $0x3e8] sm:$0xff]
  %v260 = vld [vmem:[%s2 + $0x3f0] sm:$0xf]
  %v261 = vld [vmem:[%s2 + $0x3f4] sm:$0xff]
  %v262 = vld [vmem:[%s2 + $0x3fc] sm:$0xff]
  %v263 = vld [vmem:[%s2 + $0x404] sm:$0xff]
  %v264 = vld [vmem:[%s2 + $0x40c] sm:$0xff]
  %v265 = vld [vmem:[%s2 + $0x414] sm:$0xff]
  %v266 = vld [vmem:[%s2 + $0x41c] sm:$0xf]
  %v267 = vld [vmem:[%s2 + $0x420] sm:$0xff]
  %v268 = vld [vmem:[%s2 + $0x428] sm:$0xff]
  %v269 = vld [vmem:[%s2 + $0x430] sm:$0xff]
  %v270 = vld [vmem:[%s2 + $0x438] sm:$0xff]
  %v271 = vld [vmem:[%s2 + $0x440] sm:$0xff]
  %v272 = vld [vmem:[%s2 + $0x448] sm:$0xf]
  %v273 = vld [vmem:[%s2 + $0x44c] sm:$0xff]
  %v274 = vld [vmem:[%s2 + $0x454] sm:$0xff]
  %v275 = vld [vmem:[%s2 + $0x45c] sm:$0xff]
  %v276 = vld [vmem:[%s2 + $0x464] sm:$0xff]
  %v277 = vld [vmem:[%s2 + $0x46c] sm:$0xff]
  %v278 = vld [vmem:[%s2 + $0x474] sm:$0xf]
  %v279 = vld [vmem:[%s2 + $0x478] sm:$0xff]
  %v280 = vld [vmem:[%s2 + $0x480] sm:$0xff]
  %v281 = vld [vmem:[%s2 + $0x488] sm:$0xff]
  %v282 = vld [vmem:[%s2 + $0x490] sm:$0xff]
  %v283 = vld [vmem:[%s2 + $0x498] sm:$0xff]
  %v284 = vld [vmem:[%s2 + $0x4a0] sm:$0xf]
  %v285 = vld [vmem:[%s2 + $0x4a4] sm:$0xff]
  %v286 = vld [vmem:[%s2 + $0x4ac] sm:$0xff]
  %v287 = vld [vmem:[%s2 + $0x4b4] sm:$0xff]
  %v288 = vld [vmem:[%s2 + $0x4bc] sm:$0xff]
  %v289 = vld [vmem:[%s2 + $0x4c4] sm:$0xff]
  %v290 = vld [vmem:[%s2 + $0x4cc] sm:$0xf]
  %v291 = vld [vmem:[%s2 + $0x4d0] sm:$0xff]
  %v292 = vld [vmem:[%s2 + $0x4d8] sm:$0xff]
  %v293 = vld [vmem:[%s2 + $0x4e0] sm:$0xff]
  %v294 = vld [vmem:[%s2 + $0x4e8] sm:$0xff]
  %v295 = vld [vmem:[%s2 + $0x4f0] sm:$0xff]
  %v296 = vld [vmem:[%s2 + $0x4f8] sm:$0xf]
  %297 = vxpose.xlu0.c.b16.start [1/8] %v108, 128
  %298 = vxpose.xlu0.c.b16.cont [2/8] %v109, 128
  %299 = vxpose.xlu0.c.b16.cont [3/8] %v110, 128
  %300 = vxpose.xlu0.c.b16.cont [4/8] %v111, 128
  %301 = vxpose.xlu0.c.b16.cont [5/8] %v112, 128
  %302 = vxpose.xlu0.c.b16.cont [6/8] %v113, 128
  %303 = vxpose.xlu0.c.b16.cont [7/8] %v114, 128
  %304 = vxpose.xlu0.c.b16.end [8/8] %v115, 128
  %v305 = vpop.trf.xlu0
  %v306 = vpop.trf.xlu0
  %v307 = vpop.trf.xlu0
  %v308 = vpop.trf.xlu0
  %v309 = vpop.trf.xlu0
  %v310 = vpop.trf.xlu0
  %v311 = vpop.trf.xlu0
  %v312 = vpop.trf.xlu0
  %313 = vxpose.xlu0.c.b16.start [1/8] %v116, 128
  %314 = vxpose.xlu0.c.b16.cont [2/8] %v117, 128
  %315 = vxpose.xlu0.c.b16.cont [3/8] %v118, 128
  %316 = vxpose.xlu0.c.b16.cont [4/8] %v119, 128
  %317 = vxpose.xlu0.c.b16.cont [5/8] %v120, 128
  %318 = vxpose.xlu0.c.b16.cont [6/8] %v121, 128
  %319 = vxpose.xlu0.c.b16.cont [7/8] %v122, 128
  %320 = vxpose.xlu0.c.b16.end [8/8] 0, 128
  %v321 = vpop.trf.xlu0
  %v322 = vpop.trf.xlu0
  %v323 = vpop.trf.xlu0
  %v324 = vpop.trf.xlu0
  %v325 = vpop.trf.xlu0
  %v326 = vpop.trf.xlu0
  %v327 = vpop.trf.xlu0
  %v328 = vpop.trf.xlu0
  %v503 = vunpack.c.l.b16 %v123
  %v504 = vunpack.c.h.b16 %v123
  %v505 = vunpack.c.l.b16 %v124
  %v506 = vunpack.c.h.b16 %v124
  %v507 = vunpack.c.l.b16 %v125
  %v508 = vunpack.c.h.b16 %v125
  %v509 = vunpack.c.l.b16 %v126
  %v510 = vunpack.c.h.b16 %v126
  %v511 = vunpack.c.l.b16 %v127
  %v512 = vunpack.c.h.b16 %v127
  %v513 = vunpack.c.l.b16 %v128
  %v514 = vunpack.c.l.b16 %v129
  %v515 = vunpack.c.h.b16 %v129
  %v516 = vunpack.c.l.b16 %v130
  %v517 = vunpack.c.h.b16 %v130
  %v518 = vunpack.c.l.b16 %v131
  %v519 = vunpack.c.h.b16 %v131
  %v520 = vunpack.c.l.b16 %v132
  %v521 = vunpack.c.h.b16 %v132
  %v522 = vunpack.c.l.b16 %v133
  %v523 = vunpack.c.h.b16 %v133
  %v524 = vunpack.c.l.b16 %v134
  %v525 = vunpack.c.l.b16 %v135
  %v526 = vunpack.c.h.b16 %v135
  %v527 = vunpack.c.l.b16 %v136
  %v528 = vunpack.c.h.b16 %v136
  %v529 = vunpack.c.l.b16 %v137
  %v530 = vunpack.c.h.b16 %v137
  %v531 = vunpack.c.l.b16 %v138
  %v532 = vunpack.c.h.b16 %v138
  %v533 = vunpack.c.l.b16 %v139
  %v534 = vunpack.c.h.b16 %v139
  %v535 = vunpack.c.l.b16 %v140
  %v536 = vunpack.c.l.b16 %v141
  %v537 = vunpack.c.h.b16 %v141
  %v538 = vunpack.c.l.b16 %v142
  %v539 = vunpack.c.h.b16 %v142
  %v540 = vunpack.c.l.b16 %v143
  %v541 = vunpack.c.h.b16 %v143
  %v542 = vunpack.c.l.b16 %v144
  %v543 = vunpack.c.h.b16 %v144
  %v544 = vunpack.c.l.b16 %v145
  %v545 = vunpack.c.h.b16 %v145
  %v546 = vunpack.c.l.b16 %v146
  %v547 = vunpack.c.l.b16 %v147
  %v548 = vunpack.c.h.b16 %v147
  %v549 = vunpack.c.l.b16 %v148
  %v550 = vunpack.c.h.b16 %v148
  %v551 = vunpack.c.l.b16 %v149
  %v552 = vunpack.c.h.b16 %v149
  %v553 = vunpack.c.l.b16 %v150
  %v554 = vunpack.c.h.b16 %v150
  %v555 = vunpack.c.l.b16 %v151
  %v556 = vunpack.c.h.b16 %v151
  %v557 = vunpack.c.l.b16 %v152
  %v558 = vunpack.c.l.b16 %v153
  %v559 = vunpack.c.h.b16 %v153
  %v560 = vunpack.c.l.b16 %v154
  %v561 = vunpack.c.h.b16 %v154
  %v562 = vunpack.c.l.b16 %v155
  %v563 = vunpack.c.h.b16 %v155
  %v564 = vunpack.c.l.b16 %v156
  %v565 = vunpack.c.h.b16 %v156
  %v566 = vunpack.c.l.b16 %v157
  %v567 = vunpack.c.h.b16 %v157
  %v568 = vunpack.c.l.b16 %v158
  %v569 = vunpack.c.l.b16 %v159
  %v570 = vunpack.c.h.b16 %v159
  %v571 = vunpack.c.l.b16 %v160
  %v572 = vunpack.c.h.b16 %v160
  %v573 = vunpack.c.l.b16 %v161
  %v574 = vunpack.c.h.b16 %v161
  %v575 = vunpack.c.l.b16 %v162
  %v576 = vunpack.c.h.b16 %v162
  %v577 = vunpack.c.l.b16 %v163
  %v578 = vunpack.c.h.b16 %v163
  %v579 = vunpack.c.l.b16 %v164
  %v580 = vunpack.c.l.b16 %v165
  %v581 = vunpack.c.h.b16 %v165
  %v582 = vunpack.c.l.b16 %v166
  %v583 = vunpack.c.h.b16 %v166
  %v584 = vunpack.c.l.b16 %v167
  %v585 = vunpack.c.h.b16 %v167
  %v586 = vunpack.c.l.b16 %v168
  %v587 = vunpack.c.h.b16 %v168
  %v588 = vunpack.c.l.b16 %v169
  %v589 = vunpack.c.h.b16 %v169
  %v590 = vunpack.c.l.b16 %v170
  %v591 = vunpack.c.l.b16 %v171
  %v592 = vunpack.c.h.b16 %v171
  %v593 = vunpack.c.l.b16 %v172
  %v594 = vunpack.c.h.b16 %v172
  %v595 = vunpack.c.l.b16 %v173
  %v596 = vunpack.c.h.b16 %v173
  %v597 = vunpack.c.l.b16 %v174
  %v598 = vunpack.c.h.b16 %v174
  %v599 = vunpack.c.l.b16 %v175
  %v600 = vunpack.c.h.b16 %v175
  %v601 = vunpack.c.l.b16 %v176
  %v602 = vunpack.c.l.b16 %v177
  %v603 = vunpack.c.h.b16 %v177
  %v604 = vunpack.c.l.b16 %v178
  %v605 = vunpack.c.h.b16 %v178
  %v606 = vunpack.c.l.b16 %v179
  %v607 = vunpack.c.h.b16 %v179
  %v608 = vunpack.c.l.b16 %v180
  %v609 = vunpack.c.h.b16 %v180
  %v610 = vunpack.c.l.b16 %v181
  %v611 = vunpack.c.h.b16 %v181
  %v612 = vunpack.c.l.b16 %v182
  %v613 = vunpack.c.l.b16 %v183
  %v614 = vunpack.c.h.b16 %v183
  %v615 = vunpack.c.l.b16 %v184
  %v616 = vunpack.c.h.b16 %v184
  %v617 = vunpack.c.l.b16 %v185
  %v618 = vunpack.c.h.b16 %v185
  %v619 = vunpack.c.l.b16 %v186
  %v620 = vunpack.c.h.b16 %v186
  %v621 = vunpack.c.l.b16 %v187
  %v622 = vunpack.c.h.b16 %v187
  %v623 = vunpack.c.l.b16 %v188
  %v624 = vunpack.c.l.b16 %v189
  %v625 = vunpack.c.h.b16 %v189
  %v626 = vunpack.c.l.b16 %v190
  %v627 = vunpack.c.h.b16 %v190
  %v628 = vunpack.c.l.b16 %v191
  %v629 = vunpack.c.h.b16 %v191
  %v630 = vunpack.c.l.b16 %v192
  %v631 = vunpack.c.h.b16 %v192
  %v632 = vunpack.c.l.b16 %v193
  %v633 = vunpack.c.h.b16 %v193
  %v634 = vunpack.c.l.b16 %v194
  %v635 = vunpack.c.l.b16 %v195
  %v636 = vunpack.c.h.b16 %v195
  %v637 = vunpack.c.l.b16 %v196
  %v638 = vunpack.c.h.b16 %v196
  %v639 = vunpack.c.l.b16 %v197
  %v640 = vunpack.c.h.b16 %v197
  %v641 = vunpack.c.l.b16 %v198
  %v642 = vunpack.c.h.b16 %v198
  %v643 = vunpack.c.l.b16 %v199
  %v644 = vunpack.c.h.b16 %v199
  %v645 = vunpack.c.l.b16 %v200
  %v646 = vunpack.c.l.b16 %v201
  %v647 = vunpack.c.h.b16 %v201
  %v648 = vunpack.c.l.b16 %v202
  %v649 = vunpack.c.h.b16 %v202
  %v650 = vunpack.c.l.b16 %v203
  %v651 = vunpack.c.h.b16 %v203
  %v652 = vunpack.c.l.b16 %v204
  %v653 = vunpack.c.h.b16 %v204
  %v654 = vunpack.c.l.b16 %v205
  %v655 = vunpack.c.h.b16 %v205
  %v656 = vunpack.c.l.b16 %v206
  %v657 = vunpack.c.l.b16 %v207
  %v658 = vunpack.c.h.b16 %v207
  %v659 = vunpack.c.l.b16 %v208
  %v660 = vunpack.c.h.b16 %v208
  %v661 = vunpack.c.l.b16 %v209
  %v662 = vunpack.c.h.b16 %v209
  %v663 = vunpack.c.l.b16 %v210
  %v664 = vunpack.c.h.b16 %v210
  %v665 = vunpack.c.l.b16 %v211
  %v666 = vunpack.c.h.b16 %v211
  %v667 = vunpack.c.l.b16 %v212
  %v668 = vunpack.c.l.b16 %v213
  %v669 = vunpack.c.h.b16 %v213
  %v670 = vunpack.c.l.b16 %v214
  %v671 = vunpack.c.h.b16 %v214
  %v672 = vunpack.c.l.b16 %v215
  %v673 = vunpack.c.h.b16 %v215
  %v674 = vunpack.c.l.b16 %v216
  %v675 = vunpack.c.h.b16 %v216
  %v676 = vunpack.c.l.b16 %v217
  %v677 = vunpack.c.h.b16 %v217
  %v678 = vunpack.c.l.b16 %v218
  %v679 = vunpack.c.l.b16 %v219
  %v680 = vunpack.c.h.b16 %v219
  %v681 = vunpack.c.l.b16 %v220
  %v682 = vunpack.c.h.b16 %v220
  %v683 = vunpack.c.l.b16 %v221
  %v684 = vunpack.c.h.b16 %v221
  %v685 = vunpack.c.l.b16 %v222
  %v686 = vunpack.c.h.b16 %v222
  %v687 = vunpack.c.l.b16 %v223
  %v688 = vunpack.c.h.b16 %v223
  %v689 = vunpack.c.l.b16 %v224
  %v690 = vunpack.c.l.b16 %v225
  %v691 = vunpack.c.h.b16 %v225
  %v692 = vunpack.c.l.b16 %v226
  %v693 = vunpack.c.h.b16 %v226
  %v694 = vunpack.c.l.b16 %v227
  %v695 = vunpack.c.h.b16 %v227
  %v696 = vunpack.c.l.b16 %v228
  %v697 = vunpack.c.h.b16 %v228
  %v698 = vunpack.c.l.b16 %v229
  %v699 = vunpack.c.h.b16 %v229
  %v700 = vunpack.c.l.b16 %v230
  %v701 = vunpack.c.l.b16 %v231
  %v702 = vunpack.c.h.b16 %v231
  %v703 = vunpack.c.l.b16 %v232
  %v704 = vunpack.c.h.b16 %v232
  %v705 = vunpack.c.l.b16 %v233
  %v706 = vunpack.c.h.b16 %v233
  %v707 = vunpack.c.l.b16 %v234
  %v708 = vunpack.c.h.b16 %v234
  %v709 = vunpack.c.l.b16 %v235
  %v710 = vunpack.c.h.b16 %v235
  %v711 = vunpack.c.l.b16 %v236
  %v712 = vunpack.c.l.b16 %v237
  %v713 = vunpack.c.h.b16 %v237
  %v714 = vunpack.c.l.b16 %v238
  %v715 = vunpack.c.h.b16 %v238
  %v716 = vunpack.c.l.b16 %v239
  %v717 = vunpack.c.h.b16 %v239
  %v718 = vunpack.c.l.b16 %v240
  %v719 = vunpack.c.h.b16 %v240
  %v720 = vunpack.c.l.b16 %v241
  %v721 = vunpack.c.h.b16 %v241
  %v722 = vunpack.c.l.b16 %v242
  %v723 = vunpack.c.l.b16 %v243
  %v724 = vunpack.c.h.b16 %v243
  %v725 = vunpack.c.l.b16 %v244
  %v726 = vunpack.c.h.b16 %v244
  %v727 = vunpack.c.l.b16 %v245
  %v728 = vunpack.c.h.b16 %v245
  %v729 = vunpack.c.l.b16 %v246
  %v730 = vunpack.c.h.b16 %v246
  %v731 = vunpack.c.l.b16 %v247
  %v732 = vunpack.c.h.b16 %v247
  %v733 = vunpack.c.l.b16 %v248
  %v734 = vunpack.c.l.b16 %v249
  %v735 = vunpack.c.h.b16 %v249
  %v736 = vunpack.c.l.b16 %v250
  %v737 = vunpack.c.h.b16 %v250
  %v738 = vunpack.c.l.b16 %v251
  %v739 = vunpack.c.h.b16 %v251
  %v740 = vunpack.c.l.b16 %v252
  %v741 = vunpack.c.h.b16 %v252
  %v742 = vunpack.c.l.b16 %v253
  %v743 = vunpack.c.h.b16 %v253
  %v744 = vunpack.c.l.b16 %v254
  %v745 = vunpack.c.l.b16 %v255
  %v746 = vunpack.c.h.b16 %v255
  %v747 = vunpack.c.l.b16 %v256
  %v748 = vunpack.c.h.b16 %v256
  %v749 = vunpack.c.l.b16 %v257
  %v750 = vunpack.c.h.b16 %v257
  %v751 = vunpack.c.l.b16 %v258
  %v752 = vunpack.c.h.b16 %v258
  %v753 = vunpack.c.l.b16 %v259
  %v754 = vunpack.c.h.b16 %v259
  %v755 = vunpack.c.l.b16 %v260
  %v756 = vunpack.c.l.b16 %v261
  %v757 = vunpack.c.h.b16 %v261
  %v758 = vunpack.c.l.b16 %v262
  %v759 = vunpack.c.h.b16 %v262
  %v760 = vunpack.c.l.b16 %v263
  %v761 = vunpack.c.h.b16 %v263
  %v762 = vunpack.c.l.b16 %v264
  %v763 = vunpack.c.h.b16 %v264
  %v764 = vunpack.c.l.b16 %v265
  %v765 = vunpack.c.h.b16 %v265
  %v766 = vunpack.c.l.b16 %v266
  %v767 = vunpack.c.l.b16 %v267
  %v768 = vunpack.c.h.b16 %v267
  %v769 = vunpack.c.l.b16 %v268
  %v770 = vunpack.c.h.b16 %v268
  %v771 = vunpack.c.l.b16 %v269
  %v772 = vunpack.c.h.b16 %v269
  %v773 = vunpack.c.l.b16 %v270
  %v774 = vunpack.c.h.b16 %v270
  %v775 = vunpack.c.l.b16 %v271
  %v776 = vunpack.c.h.b16 %v271
  %v777 = vunpack.c.l.b16 %v272
  %v778 = vunpack.c.l.b16 %v273
  %v779 = vunpack.c.h.b16 %v273
  %v780 = vunpack.c.l.b16 %v274
  %v781 = vunpack.c.h.b16 %v274
  %v782 = vunpack.c.l.b16 %v275
  %v783 = vunpack.c.h.b16 %v275
  %v784 = vunpack.c.l.b16 %v276
  %v785 = vunpack.c.h.b16 %v276
  %v786 = vunpack.c.l.b16 %v277
  %v787 = vunpack.c.h.b16 %v277
  %v788 = vunpack.c.l.b16 %v278
  %v789 = vunpack.c.l.b16 %v279
  %v790 = vunpack.c.h.b16 %v279
  %v791 = vunpack.c.l.b16 %v280
  %v792 = vunpack.c.h.b16 %v280
  %v793 = vunpack.c.l.b16 %v281
  %v794 = vunpack.c.h.b16 %v281
  %v795 = vunpack.c.l.b16 %v282
  %v796 = vunpack.c.h.b16 %v282
  %v797 = vunpack.c.l.b16 %v283
  %v798 = vunpack.c.h.b16 %v283
  %v799 = vunpack.c.l.b16 %v284
  %v800 = vunpack.c.l.b16 %v285
  %v801 = vunpack.c.h.b16 %v285
  %v802 = vunpack.c.l.b16 %v286
  %v803 = vunpack.c.h.b16 %v286
  %v804 = vunpack.c.l.b16 %v287
  %v805 = vunpack.c.h.b16 %v287
  %v806 = vunpack.c.l.b16 %v288
  %v807 = vunpack.c.h.b16 %v288
  %v808 = vunpack.c.l.b16 %v289
  %v809 = vunpack.c.h.b16 %v289
  %v810 = vunpack.c.l.b16 %v290
  %v811 = vunpack.c.l.b16 %v291
  %v812 = vunpack.c.h.b16 %v291
  %v813 = vunpack.c.l.b16 %v292
  %v814 = vunpack.c.h.b16 %v292
  %v815 = vunpack.c.l.b16 %v293
  %v816 = vunpack.c.h.b16 %v293
  %v817 = vunpack.c.l.b16 %v294
  %v818 = vunpack.c.h.b16 %v294
  %v819 = vunpack.c.l.b16 %v295
  %v820 = vunpack.c.h.b16 %v295
  %v821 = vunpack.c.l.b16 %v296
  %v822 = vpack.c.b16 %v514, %v503
  %v823 = vpack.c.b16 %v515, %v504
  %v824 = vpack.c.b16 %v516, %v505
  %v825 = vpack.c.b16 %v517, %v506
  %v826 = vpack.c.b16 %v518, %v507
  %v827 = vpack.c.b16 %v519, %v508
  %v828 = vpack.c.b16 %v520, %v509
  %v829 = vpack.c.b16 %v521, %v510
  %v830 = vpack.c.b16 %v522, %v511
  %v831 = vpack.c.b16 %v523, %v512
  %v832 = vpack.c.b16 %v524, %v513
  %v833 = vpack.c.b16 %v536, %v525
  %v834 = vpack.c.b16 %v537, %v526
  %v835 = vpack.c.b16 %v538, %v527
  %v836 = vpack.c.b16 %v539, %v528
  %v837 = vpack.c.b16 %v540, %v529
  %v838 = vpack.c.b16 %v541, %v530
  %v839 = vpack.c.b16 %v542, %v531
  %v840 = vpack.c.b16 %v543, %v532
  %v841 = vpack.c.b16 %v544, %v533
  %v842 = vpack.c.b16 %v545, %v534
  %v843 = vpack.c.b16 %v546, %v535
  %v844 = vpack.c.b16 %v558, %v547
  %v845 = vpack.c.b16 %v559, %v548
  %v846 = vpack.c.b16 %v560, %v549
  %v847 = vpack.c.b16 %v561, %v550
  %v848 = vpack.c.b16 %v562, %v551
  %v849 = vpack.c.b16 %v563, %v552
  %v850 = vpack.c.b16 %v564, %v553
  %v851 = vpack.c.b16 %v565, %v554
  %v852 = vpack.c.b16 %v566, %v555
  %v853 = vpack.c.b16 %v567, %v556
  %v854 = vpack.c.b16 %v568, %v557
  %v855 = vpack.c.b16 %v580, %v569
  %v856 = vpack.c.b16 %v581, %v570
  %v857 = vpack.c.b16 %v582, %v571
  %v858 = vpack.c.b16 %v583, %v572
  %v859 = vpack.c.b16 %v584, %v573
  %v860 = vpack.c.b16 %v585, %v574
  %v861 = vpack.c.b16 %v586, %v575
  %v862 = vpack.c.b16 %v587, %v576
  %v863 = vpack.c.b16 %v588, %v577
  %v864 = vpack.c.b16 %v589, %v578
  %v865 = vpack.c.b16 %v590, %v579
  %v866 = vpack.c.b16 %v602, %v591
  %v867 = vpack.c.b16 %v603, %v592
  %v868 = vpack.c.b16 %v604, %v593
  %v869 = vpack.c.b16 %v605, %v594
  %v870 = vpack.c.b16 %v606, %v595
  %v871 = vpack.c.b16 %v607, %v596
  %v872 = vpack.c.b16 %v608, %v597
  %v873 = vpack.c.b16 %v609, %v598
  %v874 = vpack.c.b16 %v610, %v599
  %v875 = vpack.c.b16 %v611, %v600
  %v876 = vpack.c.b16 %v612, %v601
  %v877 = vpack.c.b16 %v624, %v613
  %v878 = vpack.c.b16 %v625, %v614
  %v879 = vpack.c.b16 %v626, %v615
  %v880 = vpack.c.b16 %v627, %v616
  %v881 = vpack.c.b16 %v628, %v617
  %v882 = vpack.c.b16 %v629, %v618
  %v883 = vpack.c.b16 %v630, %v619
  %v884 = vpack.c.b16 %v631, %v620
  %v885 = vpack.c.b16 %v632, %v621
  %v886 = vpack.c.b16 %v633, %v622
  %v887 = vpack.c.b16 %v634, %v623
  %v888 = vpack.c.b16 %v646, %v635
  %v889 = vpack.c.b16 %v647, %v636
  %v890 = vpack.c.b16 %v648, %v637
  %v891 = vpack.c.b16 %v649, %v638
  %v892 = vpack.c.b16 %v650, %v639
  %v893 = vpack.c.b16 %v651, %v640
  %v894 = vpack.c.b16 %v652, %v641
  %v895 = vpack.c.b16 %v653, %v642
  %v896 = vpack.c.b16 %v654, %v643
  %v897 = vpack.c.b16 %v655, %v644
  %v898 = vpack.c.b16 %v656, %v645
  %v899 = vpack.c.b16 %v668, %v657
  %v900 = vpack.c.b16 %v669, %v658
  %v901 = vpack.c.b16 %v670, %v659
  %v902 = vpack.c.b16 %v671, %v660
  %v903 = vpack.c.b16 %v672, %v661
  %v904 = vpack.c.b16 %v673, %v662
  %v905 = vpack.c.b16 %v674, %v663
  %v906 = vpack.c.b16 %v675, %v664
  %v907 = vpack.c.b16 %v676, %v665
  %v908 = vpack.c.b16 %v677, %v666
  %v909 = vpack.c.b16 %v678, %v667
  %v910 = vpack.c.b16 %v690, %v679
  %v911 = vpack.c.b16 %v691, %v680
  %v912 = vpack.c.b16 %v692, %v681
  %v913 = vpack.c.b16 %v693, %v682
  %v914 = vpack.c.b16 %v694, %v683
  %v915 = vpack.c.b16 %v695, %v684
  %v916 = vpack.c.b16 %v696, %v685
  %v917 = vpack.c.b16 %v697, %v686
  %v918 = vpack.c.b16 %v698, %v687
  %v919 = vpack.c.b16 %v699, %v688
  %v920 = vpack.c.b16 %v700, %v689
  %v921 = vpack.c.b16 %v712, %v701
  %v922 = vpack.c.b16 %v713, %v702
  %v923 = vpack.c.b16 %v714, %v703
  %v924 = vpack.c.b16 %v715, %v704
  %v925 = vpack.c.b16 %v716, %v705
  %v926 = vpack.c.b16 %v717, %v706
  %v927 = vpack.c.b16 %v718, %v707
  %v928 = vpack.c.b16 %v719, %v708
  %v929 = vpack.c.b16 %v720, %v709
  %v930 = vpack.c.b16 %v721, %v710
  %v931 = vpack.c.b16 %v722, %v711
  %v932 = vpack.c.b16 %v734, %v723
  %v933 = vpack.c.b16 %v735, %v724
  %v934 = vpack.c.b16 %v736, %v725
  %v935 = vpack.c.b16 %v737, %v726
  %v936 = vpack.c.b16 %v738, %v727
  %v937 = vpack.c.b16 %v739, %v728
  %v938 = vpack.c.b16 %v740, %v729
  %v939 = vpack.c.b16 %v741, %v730
  %v940 = vpack.c.b16 %v742, %v731
  %v941 = vpack.c.b16 %v743, %v732
  %v942 = vpack.c.b16 %v744, %v733
  %v943 = vpack.c.b16 %v756, %v745
  %v944 = vpack.c.b16 %v757, %v746
  %v945 = vpack.c.b16 %v758, %v747
  %v946 = vpack.c.b16 %v759, %v748
  %v947 = vpack.c.b16 %v760, %v749
  %v948 = vpack.c.b16 %v761, %v750
  %v949 = vpack.c.b16 %v762, %v751
  %v950 = vpack.c.b16 %v763, %v752
  %v951 = vpack.c.b16 %v764, %v753
  %v952 = vpack.c.b16 %v765, %v754
  %v953 = vpack.c.b16 %v766, %v755
  %v954 = vpack.c.b16 %v778, %v767
  %v955 = vpack.c.b16 %v779, %v768
  %v956 = vpack.c.b16 %v780, %v769
  %v957 = vpack.c.b16 %v781, %v770
  %v958 = vpack.c.b16 %v782, %v771
  %v959 = vpack.c.b16 %v783, %v772
  %v960 = vpack.c.b16 %v784, %v773
  %v961 = vpack.c.b16 %v785, %v774
  %v962 = vpack.c.b16 %v786, %v775
  %v963 = vpack.c.b16 %v787, %v776
  %v964 = vpack.c.b16 %v788, %v777
  %v965 = vpack.c.b16 %v800, %v789
  %v966 = vpack.c.b16 %v801, %v790
  %v967 = vpack.c.b16 %v802, %v791
  %v968 = vpack.c.b16 %v803, %v792
  %v969 = vpack.c.b16 %v804, %v793
  %v970 = vpack.c.b16 %v805, %v794
  %v971 = vpack.c.b16 %v806, %v795
  %v972 = vpack.c.b16 %v807, %v796
  %v973 = vpack.c.b16 %v808, %v797
  %v974 = vpack.c.b16 %v809, %v798
  %v975 = vpack.c.b16 %v810, %v799
  %v976 = vpack.c.b16 %v811, %v811
  %v977 = vpack.c.b16 %v812, %v812
  %v978 = vpack.c.b16 %v813, %v813
  %v979 = vpack.c.b16 %v814, %v814
  %v980 = vpack.c.b16 %v815, %v815
  %v981 = vpack.c.b16 %v816, %v816
  %v982 = vpack.c.b16 %v817, %v817
  %v983 = vpack.c.b16 %v818, %v818
  %v984 = vpack.c.b16 %v819, %v819
  %v985 = vpack.c.b16 %v820, %v820
  %v986 = vpack.c.b16 %v821, %v821
  %vm1141 = vcmask 850944
  %v1143 = vsel %vm1141, %v321, 0
  %v1146 = vsel %vm1141, %v322, 0
  %v1149 = vsel %vm1141, %v323, 0
  %v1152 = vsel %vm1141, %v324, 0
  %vm1154 = vcmask 1043456
  %v1156 = vsel %vm1154, %v976, 0
  %v1159 = vsel %vm1154, %v977, 0
  %v1162 = vsel %vm1154, %v978, 0
  %v1165 = vsel %vm1154, %v979, 0
  %v1168 = vsel %vm1154, %v980, 0
  %v1171 = vsel %vm1154, %v981, 0
  %v1174 = vsel %vm1154, %v982, 0
  %v1177 = vsel %vm1154, %v983, 0
  %v1180 = vsel %vm1154, %v984, 0
  %v1183 = vsel %vm1154, %v985, 0
  %v1186 = vsel %vm1154, %v986, 0
  %1188 = vmatprep.subr.bf16.mxu0 %v823
  %1189 = vmatpush1.bf16.msra.mxu0 %v822
  %1190 = vmatprep.subr.bf16.mxu0 %v834
  %1191 = vmatpush1.bf16.msra.mxu0 %v833
  %1192 = vmatprep.subr.bf16.mxu0 %v845
  %1193 = vmatpush1.bf16.msra.mxu0 %v844
  %1194 = vmatprep.subr.bf16.mxu0 %v856
  %1195 = vmatpush1.bf16.msra.mxu0 %v855
  %1196 = vmatprep.subr.bf16.mxu0 %v867
  %1197 = vmatpush1.bf16.msra.mxu0 %v866
  %1198 = vmatprep.subr.bf16.mxu0 %v878
  %1199 = vmatpush1.bf16.msra.mxu0 %v877
  %1200 = vmatprep.subr.bf16.mxu0 %v889
  %1201 = vmatpush1.bf16.msra.mxu0 %v888
  %1202 = vmatprep.subr.bf16.mxu0 %v900
  %1203 = vmatpush1.bf16.msra.mxu0 %v899
  %1204 = vmatprep.subr.bf16.mxu0 %v911
  %1205 = vmatpush1.bf16.msra.mxu0 %v910
  %1206 = vmatprep.subr.bf16.mxu0 %v922
  %1207 = vmatpush1.bf16.msra.mxu0 %v921
  %1208 = vmatprep.subr.bf16.mxu0 %v933
  %1209 = vmatpush1.bf16.msra.mxu0 %v932
  %1210 = vmatprep.subr.bf16.mxu0 %v944
  %1211 = vmatpush1.bf16.msra.mxu0 %v943
  %1212 = vmatprep.subr.bf16.mxu0 %v955
  %1213 = vmatpush1.bf16.msra.mxu0 %v954
  %1214 = vmatprep.subr.bf16.mxu0 %v966
  %1215 = vmatpush1.bf16.msra.mxu0 %v965
  %1216 = vmatprep.subr.bf16.mxu0 %v1159
  %1217 = vmatpush1.bf16.msra.mxu0 %v1156
  %1218 = vmatprep.subr.bf16.mxu0 0
  %1219 = vmatpush1.bf16.msra.mxu0 0
  %1220 = vmatprep.mubr.bf16.mxu0 %v1143
  %1221 = vmatmul.mubr.bf16.gmra.mrb[0].mxu0 %v305
  %v1222 = vpop.f32.mrb[0].mxu0
  %v1223 = vadd.f32 0.0, %v1222
  %v1224 = vpop.f32.mrb[0].mxu0
  %v1225 = vadd.f32 0.0, %v1224
  %v1226 = vpop.f32.mrb[0].mxu0
  %v1227 = vadd.f32 0.0, %v1226
  %v1228 = vpop.f32.mrb[0].mxu0
  %v1229 = vadd.f32 0.0, %v1228
  %1230 = vmatprep.mubr.bf16.mxu0 %v1146
  %1231 = vmatmul.mubr.bf16.gmra.mrb[0].mxu0 %v306
  %v1232 = vpop.f32.mrb[0].mxu0
  %v1233 = vadd.f32 0.0, %v1232
  %v1234 = vpop.f32.mrb[0].mxu0
  %v1235 = vadd.f32 0.0, %v1234
  %v1236 = vpop.f32.mrb[0].mxu0
  %v1237 = vadd.f32 0.0, %v1236
  %v1238 = vpop.f32.mrb[0].mxu0
  %v1239 = vadd.f32 0.0, %v1238
  %1240 = vmatprep.mubr.bf16.mxu0 %v1149
  %1241 = vmatmul.mubr.bf16.gmra.mrb[0].mxu0 %v307
  %v1242 = vpop.f32.mrb[0].mxu0
  %v1243 = vadd.f32 0.0, %v1242
  %v1244 = vpop.f32.mrb[0].mxu0
  %v1245 = vadd.f32 0.0, %v1244
  %v1246 = vpop.f32.mrb[0].mxu0
  %v1247 = vadd.f32 0.0, %v1246
  %v1248 = vpop.f32.mrb[0].mxu0
  %v1249 = vadd.f32 0.0, %v1248
  %1250 = vmatprep.mubr.bf16.mxu0 %v1152
  %1251 = vmatmul.mubr.bf16.gmra.mrb[0].mxu0 %v308
  %v1252 = vpop.f32.mrb[0].mxu0
  %v1253 = vadd.f32 0.0, %v1252
  %v1254 = vpop.f32.mrb[0].mxu0
  %v1255 = vadd.f32 0.0, %v1254
  %v1256 = vpop.f32.mrb[0].mxu0
  %v1257 = vpop.f32.mrb[0].mxu0
  %1258 = vdwg.mxu0
  %1259 = vmatprep.subr.bf16.mxu0 %v825
  %1260 = vmatpush1.bf16.msra.mxu0 %v824
  %1261 = vmatprep.subr.bf16.mxu0 %v836
  %1262 = vmatpush1.bf16.msra.mxu0 %v835
  %1263 = vmatprep.subr.bf16.mxu0 %v847
  %1264 = vmatpush1.bf16.msra.mxu0 %v846
  %1265 = vmatprep.subr.bf16.mxu0 %v858
  %1266 = vmatpush1.bf16.msra.mxu0 %v857
  %1267 = vmatprep.subr.bf16.mxu0 %v869
  %1268 = vmatpush1.bf16.msra.mxu0 %v868
  %1269 = vmatprep.subr.bf16.mxu0 %v880
  %1270 = vmatpush1.bf16.msra.mxu0 %v879
  %1271 = vmatprep.subr.bf16.mxu0 %v891
  %1272 = vmatpush1.bf16.msra.mxu0 %v890
  %1273 = vmatprep.subr.bf16.mxu0 %v902
  %1274 = vmatpush1.bf16.msra.mxu0 %v901
  %1275 = vmatprep.subr.bf16.mxu0 %v913
  %1276 = vmatpush1.bf16.msra.mxu0 %v912
  %1277 = vmatprep.subr.bf16.mxu0 %v924
  %1278 = vmatpush1.bf16.msra.mxu0 %v923
  %1279 = vmatprep.subr.bf16.mxu0 %v935
  %1280 = vmatpush1.bf16.msra.mxu0 %v934
  %1281 = vmatprep.subr.bf16.mxu0 %v946
  %1282 = vmatpush1.bf16.msra.mxu0 %v945
  %1283 = vmatprep.subr.bf16.mxu0 %v957
  %1284 = vmatpush1.bf16.msra.mxu0 %v956
  %1285 = vmatprep.subr.bf16.mxu0 %v968
  %1286 = vmatpush1.bf16.msra.mxu0 %v967
  %1287 = vmatprep.subr.bf16.mxu0 %v1165
  %1288 = vmatpush1.bf16.msra.mxu0 %v1162
  %1289 = vmatprep.subr.bf16.mxu0 0
  %1290 = vmatpush1.bf16.msra.mxu0 0
  %1291 = vmatprep.mubr.bf16.mxu0 %v1143
  %1292 = vmatmul.mubr.bf16.gmra.mrb[0].mxu0 %v305
  %v1293 = vpop.f32.mrb[0].mxu0
  %v1294 = vadd.f32 0.0, %v1293
  %v1295 = vpop.f32.mrb[0].mxu0
  %v1296 = vadd.f32 0.0, %v1295
  %v1297 = vpop.f32.mrb[0].mxu0
  %v1298 = vadd.f32 0.0, %v1297
  %v1299 = vpop.f32.mrb[0].mxu0
  %v1300 = vadd.f32 0.0, %v1299
  %1301 = vmatprep.mubr.bf16.mxu0 %v1146
  %1302 = vmatmul.mubr.bf16.gmra.mrb[0].mxu0 %v306
  %v1303 = vpop.f32.mrb[0].mxu0
  %v1304 = vadd.f32 0.0, %v1303
  %v1305 = vpop.f32.mrb[0].mxu0
  %v1306 = vadd.f32 0.0, %v1305
  %v1307 = vpop.f32.mrb[0].mxu0
  %v1308 = vadd.f32 0.0, %v1307
  %v1309 = vpop.f32.mrb[0].mxu0
  %v1310 = vadd.f32 0.0, %v1309
  %1311 = vmatprep.mubr.bf16.mxu0 %v1149
  %1312 = vmatmul.mubr.bf16.gmra.mrb[0].mxu0 %v307
  %v1313 = vpop.f32.mrb[0].mxu0
  %v1314 = vadd.f32 0.0, %v1313
  %v1315 = vpop.f32.mrb[0].mxu0
  %v1316 = vadd.f32 0.0, %v1315
  %v1317 = vpop.f32.mrb[0].mxu0
  %v1318 = vadd.f32 0.0, %v1317
  %v1319 = vpop.f32.mrb[0].mxu0
  %v1320 = vadd.f32 0.0, %v1319
  %1321 = vmatprep.mubr.bf16.mxu0 %v1152
  %1322 = vmatmul.mubr.bf16.gmra.mrb[0].mxu0 %v308
  %v1323 = vpop.f32.mrb[0].mxu0
  %v1324 = vadd.f32 0.0, %v1323
  %v1325 = vpop.f32.mrb[0].mxu0
  %v1326 = vadd.f32 0.0, %v1325
  %v1327 = vpop.f32.mrb[0].mxu0
  %v1328 = vpop.f32.mrb[0].mxu0
  %1329 = vdwg.mxu0
  %1330 = vmatprep.subr.bf16.mxu0 %v827
  %1331 = vmatpush1.bf16.msra.mxu0 %v826
  %1332 = vmatprep.subr.bf16.mxu0 %v838
  %1333 = vmatpush1.bf16.msra.mxu0 %v837
  %1334 = vmatprep.subr.bf16.mxu0 %v849
  %1335 = vmatpush1.bf16.msra.mxu0 %v848
  %1336 = vmatprep.subr.bf16.mxu0 %v860
  %1337 = vmatpush1.bf16.msra.mxu0 %v859
  %1338 = vmatprep.subr.bf16.mxu0 %v871
  %1339 = vmatpush1.bf16.msra.mxu0 %v870
  %1340 = vmatprep.subr.bf16.mxu0 %v882
  %1341 = vmatpush1.bf16.msra.mxu0 %v881
  %1342 = vmatprep.subr.bf16.mxu0 %v893
  %1343 = vmatpush1.bf16.msra.mxu0 %v892
  %1344 = vmatprep.subr.bf16.mxu0 %v904
  %1345 = vmatpush1.bf16.msra.mxu0 %v903
  %1346 = vmatprep.subr.bf16.mxu0 %v915
  %1347 = vmatpush1.bf16.msra.mxu0 %v914
  %1348 = vmatprep.subr.bf16.mxu0 %v926
  %1349 = vmatpush1.bf16.msra.mxu0 %v925
  %1350 = vmatprep.subr.bf16.mxu0 %v937
  %1351 = vmatpush1.bf16.msra.mxu0 %v936
  %1352 = vmatprep.subr.bf16.mxu0 %v948
  %1353 = vmatpush1.bf16.msra.mxu0 %v947
  %1354 = vmatprep.subr.bf16.mxu0 %v959
  %1355 = vmatpush1.bf16.msra.mxu0 %v958
  %1356 = vmatprep.subr.bf16.mxu0 %v970
  %1357 = vmatpush1.bf16.msra.mxu0 %v969
  %1358 = vmatprep.subr.bf16.mxu0 %v1171
  %1359 = vmatpush1.bf16.msra.mxu0 %v1168
  %1360 = vmatprep.subr.bf16.mxu0 0
  %1361 = vmatpush1.bf16.msra.mxu0 0
  %1362 = vmatprep.mubr.bf16.mxu0 %v1143
  %1363 = vmatmul.mubr.bf16.gmra.mrb[0].mxu0 %v305
  %v1364 = vpop.f32.mrb[0].mxu0
  %v1365 = vadd.f32 0.0, %v1364
  %v1366 = vpop.f32.mrb[0].mxu0
  %v1367 = vadd.f32 0.0, %v1366
  %v1368 = vpop.f32.mrb[0].mxu0
  %v1369 = vadd.f32 0.0, %v1368
  %v1370 = vpop.f32.mrb[0].mxu0
  %v1371 = vadd.f32 0.0, %v1370
  %1372 = vmatprep.mubr.bf16.mxu0 %v1146
  %1373 = vmatmul.mubr.bf16.gmra.mrb[0].mxu0 %v306
  %v1374 = vpop.f32.mrb[0].mxu0
  %v1375 = vadd.f32 0.0, %v1374
  %v1376 = vpop.f32.mrb[0].mxu0
  %v1377 = vadd.f32 0.0, %v1376
  %v1378 = vpop.f32.mrb[0].mxu0
  %v1379 = vadd.f32 0.0, %v1378
  %v1380 = vpop.f32.mrb[0].mxu0
  %v1381 = vadd.f32 0.0, %v1380
  %1382 = vmatprep.mubr.bf16.mxu0 %v1149
  %1383 = vmatmul.mubr.bf16.gmra.mrb[0].mxu0 %v307
  %v1384 = vpop.f32.mrb[0].mxu0
  %v1385 = vadd.f32 0.0, %v1384
  %v1386 = vpop.f32.mrb[0].mxu0
  %v1387 = vadd.f32 0.0, %v1386
  %v1388 = vpop.f32.mrb[0].mxu0
  %v1389 = vadd.f32 0.0, %v1388
  %v1390 = vpop.f32.mrb[0].mxu0
  %v1391 = vadd.f32 0.0, %v1390
  %1392 = vmatprep.mubr.bf16.mxu0 %v1152
  %1393 = vmatmul.mubr.bf16.gmra.mrb[0].mxu0 %v308
  %v1394 = vpop.f32.mrb[0].mxu0
  %v1395 = vadd.f32 0.0, %v1394
  %v1396 = vpop.f32.mrb[0].mxu0
  %v1397 = vadd.f32 0.0, %v1396
  %v1398 = vpop.f32.mrb[0].mxu0
  %v1399 = vpop.f32.mrb[0].mxu0
  %1400 = vdwg.mxu0
  %1401 = vmatprep.subr.bf16.mxu0 %v829
  %1402 = vmatpush1.bf16.msra.mxu0 %v828
  %1403 = vmatprep.subr.bf16.mxu0 %v840
  %1404 = vmatpush1.bf16.msra.mxu0 %v839
  %1405 = vmatprep.subr.bf16.mxu0 %v851
  %1406 = vmatpush1.bf16.msra.mxu0 %v850
  %1407 = vmatprep.subr.bf16.mxu0 %v862
  %1408 = vmatpush1.bf16.msra.mxu0 %v861
  %1409 = vmatprep.subr.bf16.mxu0 %v873
  %1410 = vmatpush1.bf16.msra.mxu0 %v872
  %1411 = vmatprep.subr.bf16.mxu0 %v884
  %1412 = vmatpush1.bf16.msra.mxu0 %v883
  %1413 = vmatprep.subr.bf16.mxu0 %v895
  %1414 = vmatpush1.bf16.msra.mxu0 %v894
  %1415 = vmatprep.subr.bf16.mxu0 %v906
  %1416 = vmatpush1.bf16.msra.mxu0 %v905
  %1417 = vmatprep.subr.bf16.mxu0 %v917
  %1418 = vmatpush1.bf16.msra.mxu0 %v916
  %1419 = vmatprep.subr.bf16.mxu0 %v928
  %1420 = vmatpush1.bf16.msra.mxu0 %v927
  %1421 = vmatprep.subr.bf16.mxu0 %v939
  %1422 = vmatpush1.bf16.msra.mxu0 %v938
  %1423 = vmatprep.subr.bf16.mxu0 %v950
  %1424 = vmatpush1.bf16.msra.mxu0 %v949
  %1425 = vmatprep.subr.bf16.mxu0 %v961
  %1426 = vmatpush1.bf16.msra.mxu0 %v960
  %1427 = vmatprep.subr.bf16.mxu0 %v972
  %1428 = vmatpush1.bf16.msra.mxu0 %v971
  %1429 = vmatprep.subr.bf16.mxu0 %v1177
  %1430 = vmatpush1.bf16.msra.mxu0 %v1174
  %1431 = vmatprep.subr.bf16.mxu0 0
  %1432 = vmatpush1.bf16.msra.mxu0 0
  %1433 = vmatprep.mubr.bf16.mxu0 %v1143
  %1434 = vmatmul.mubr.bf16.gmra.mrb[0].mxu0 %v305
  %v1435 = vpop.f32.mrb[0].mxu0
  %v1436 = vadd.f32 0.0, %v1435
  %v1437 = vpop.f32.mrb[0].mxu0
  %v1438 = vadd.f32 0.0, %v1437
  %v1439 = vpop.f32.mrb[0].mxu0
  %v1440 = vadd.f32 0.0, %v1439
  %v1441 = vpop.f32.mrb[0].mxu0
  %v1442 = vadd.f32 0.0, %v1441
  %1443 = vmatprep.mubr.bf16.mxu0 %v1146
  %1444 = vmatmul.mubr.bf16.gmra.mrb[0].mxu0 %v306
  %v1445 = vpop.f32.mrb[0].mxu0
  %v1446 = vadd.f32 0.0, %v1445
  %v1447 = vpop.f32.mrb[0].mxu0
  %v1448 = vadd.f32 0.0, %v1447
  %v1449 = vpop.f32.mrb[0].mxu0
  %v1450 = vadd.f32 0.0, %v1449
  %v1451 = vpop.f32.mrb[0].mxu0
  %v1452 = vadd.f32 0.0, %v1451
  %1453 = vmatprep.mubr.bf16.mxu0 %v1149
  %1454 = vmatmul.mubr.bf16.gmra.mrb[0].mxu0 %v307
  %v1455 = vpop.f32.mrb[0].mxu0
  %v1456 = vadd.f32 0.0, %v1455
  %v1457 = vpop.f32.mrb[0].mxu0
  %v1458 = vadd.f32 0.0, %v1457
  %v1459 = vpop.f32.mrb[0].mxu0
  %v1460 = vadd.f32 0.0, %v1459
  %v1461 = vpop.f32.mrb[0].mxu0
  %v1462 = vadd.f32 0.0, %v1461
  %1463 = vmatprep.mubr.bf16.mxu0 %v1152
  %1464 = vmatmul.mubr.bf16.gmra.mrb[0].mxu0 %v308
  %v1465 = vpop.f32.mrb[0].mxu0
  %v1466 = vadd.f32 0.0, %v1465
  %v1467 = vpop.f32.mrb[0].mxu0
  %v1468 = vadd.f32 0.0, %v1467
  %v1469 = vpop.f32.mrb[0].mxu0
  %v1470 = vpop.f32.mrb[0].mxu0
  %1471 = vdwg.mxu0
  %1472 = vmatprep.subr.bf16.mxu0 %v831
  %1473 = vmatpush1.bf16.msra.mxu0 %v830
  %1474 = vmatprep.subr.bf16.mxu0 %v842
  %1475 = vmatpush1.bf16.msra.mxu0 %v841
  %1476 = vmatprep.subr.bf16.mxu0 %v853
  %1477 = vmatpush1.bf16.msra.mxu0 %v852
  %1478 = vmatprep.subr.bf16.mxu0 %v864
  %1479 = vmatpush1.bf16.msra.mxu0 %v863
  %1480 = vmatprep.subr.bf16.mxu0 %v875
  %1481 = vmatpush1.bf16.msra.mxu0 %v874
  %1482 = vmatprep.subr.bf16.mxu0 %v886
  %1483 = vmatpush1.bf16.msra.mxu0 %v885
  %1484 = vmatprep.subr.bf16.mxu0 %v897
  %1485 = vmatpush1.bf16.msra.mxu0 %v896
  %1486 = vmatprep.subr.bf16.mxu0 %v908
  %1487 = vmatpush1.bf16.msra.mxu0 %v907
  %1488 = vmatprep.subr.bf16.mxu0 %v919
  %1489 = vmatpush1.bf16.msra.mxu0 %v918
  %1490 = vmatprep.subr.bf16.mxu0 %v930
  %1491 = vmatpush1.bf16.msra.mxu0 %v929
  %1492 = vmatprep.subr.bf16.mxu0 %v941
  %1493 = vmatpush1.bf16.msra.mxu0 %v940
  %1494 = vmatprep.subr.bf16.mxu0 %v952
  %1495 = vmatpush1.bf16.msra.mxu0 %v951
  %1496 = vmatprep.subr.bf16.mxu0 %v963
  %1497 = vmatpush1.bf16.msra.mxu0 %v962
  %1498 = vmatprep.subr.bf16.mxu0 %v974
  %1499 = vmatpush1.bf16.msra.mxu0 %v973
  %1500 = vmatprep.subr.bf16.mxu0 %v1183
  %1501 = vmatpush1.bf16.msra.mxu0 %v1180
  %1502 = vmatprep.subr.bf16.mxu0 0
  %1503 = vmatpush1.bf16.msra.mxu0 0
  %1504 = vmatprep.mubr.bf16.mxu0 %v1143
  %1505 = vmatmul.mubr.bf16.gmra.mrb[0].mxu0 %v305
  %v1506 = vpop.f32.mrb[0].mxu0
  %v1507 = vadd.f32 0.0, %v1506
  %v1508 = vpop.f32.mrb[0].mxu0
  %v1509 = vadd.f32 0.0, %v1508
  %v1510 = vpop.f32.mrb[0].mxu0
  %v1511 = vadd.f32 0.0, %v1510
  %v1512 = vpop.f32.mrb[0].mxu0
  %v1513 = vadd.f32 0.0, %v1512
  %1514 = vmatprep.mubr.bf16.mxu0 %v1146
  %1515 = vmatmul.mubr.bf16.gmra.mrb[0].mxu0 %v306
  %v1516 = vpop.f32.mrb[0].mxu0
  %v1517 = vadd.f32 0.0, %v1516
  %v1518 = vpop.f32.mrb[0].mxu0
  %v1519 = vadd.f32 0.0, %v1518
  %v1520 = vpop.f32.mrb[0].mxu0
  %v1521 = vadd.f32 0.0, %v1520
  %v1522 = vpop.f32.mrb[0].mxu0
  %v1523 = vadd.f32 0.0, %v1522
  %1524 = vmatprep.mubr.bf16.mxu0 %v1149
  %1525 = vmatmul.mubr.bf16.gmra.mrb[0].mxu0 %v307
  %v1526 = vpop.f32.mrb[0].mxu0
  %v1527 = vadd.f32 0.0, %v1526
  %v1528 = vpop.f32.mrb[0].mxu0
  %v1529 = vadd.f32 0.0, %v1528
  %v1530 = vpop.f32.mrb[0].mxu0
  %v1531 = vadd.f32 0.0, %v1530
  %v1532 = vpop.f32.mrb[0].mxu0
  %v1533 = vadd.f32 0.0, %v1532
  %1534 = vmatprep.mubr.bf16.mxu0 %v1152
  %1535 = vmatmul.mubr.bf16.gmra.mrb[0].mxu0 %v308
  %v1536 = vpop.f32.mrb[0].mxu0
  %v1537 = vadd.f32 0.0, %v1536
  %v1538 = vpop.f32.mrb[0].mxu0
  %v1539 = vadd.f32 0.0, %v1538
  %v1540 = vpop.f32.mrb[0].mxu0
  %v1541 = vpop.f32.mrb[0].mxu0
  %1542 = vdwg.mxu0
  %1543 = vmatprep.subr.bf16.mxu0 0
  %1544 = vmatpush1.bf16.msra.mxu0 %v832
  %1545 = vmatprep.subr.bf16.mxu0 0
  %1546 = vmatpush1.bf16.msra.mxu0 %v843
  %1547 = vmatprep.subr.bf16.mxu0 0
  %1548 = vmatpush1.bf16.msra.mxu0 %v854
  %1549 = vmatprep.subr.bf16.mxu0 0
  %1550 = vmatpush1.bf16.msra.mxu0 %v865
  %1551 = vmatprep.subr.bf16.mxu0 0
  %1552 = vmatpush1.bf16.msra.mxu0 %v876
  %1553 = vmatprep.subr.bf16.mxu0 0
  %1554 = vmatpush1.bf16.msra.mxu0 %v887
  %1555 = vmatprep.subr.bf16.mxu0 0
  %1556 = vmatpush1.bf16.msra.mxu0 %v898
  %1557 = vmatprep.subr.bf16.mxu0 0
  %1558 = vmatpush1.bf16.msra.mxu0 %v909
  %1559 = vmatprep.subr.bf16.mxu0 0
  %1560 = vmatpush1.bf16.msra.mxu0 %v920
  %1561 = vmatprep.subr.bf16.mxu0 0
  %1562 = vmatpush1.bf16.msra.mxu0 %v931
  %1563 = vmatprep.subr.bf16.mxu0 0
  %1564 = vmatpush1.bf16.msra.mxu0 %v942
  %1565 = vmatprep.subr.bf16.mxu0 0
  %1566 = vmatpush1.bf16.msra.mxu0 %v953
  %1567 = vmatprep.subr.bf16.mxu0 0
  %1568 = vmatpush1.bf16.msra.mxu0 %v964
  %1569 = vmatprep.subr.bf16.mxu0 0
  %1570 = vmatpush1.bf16.msra.mxu0 %v975
  %1571 = vmatprep.subr.bf16.mxu0 0
  %1572 = vmatpush1.bf16.msra.mxu0 %v1186
  %1573 = vmatprep.subr.bf16.mxu0 0
  %1574 = vmatpush1.bf16.msra.mxu0 0
  %1575 = vmatprep.mubr.bf16.mxu0 %v1143
  %1576 = vmatmul.mubr.bf16.gmra.mrb[0].mxu0 %v305
  %v1577 = vpop.f32.mrb[0].mxu0
  %v1578 = vadd.f32 0.0, %v1577
  %v1579 = vpop.f32.mrb[0].mxu0
  %v1580 = vpop.f32.mrb[0].mxu0
  %v1581 = vadd.f32 0.0, %v1580
  %v1582 = vpop.f32.mrb[0].mxu0
  %1583 = vmatprep.mubr.bf16.mxu0 %v1146
  %1584 = vmatmul.mubr.bf16.gmra.mrb[0].mxu0 %v306
  %v1585 = vpop.f32.mrb[0].mxu0
  %v1586 = vadd.f32 0.0, %v1585
  %v1587 = vpop.f32.mrb[0].mxu0
  %v1588 = vpop.f32.mrb[0].mxu0
  %v1589 = vadd.f32 0.0, %v1588
  %v1590 = vpop.f32.mrb[0].mxu0
  %1591 = vmatprep.mubr.bf16.mxu0 %v1149
  %1592 = vmatmul.mubr.bf16.gmra.mrb[0].mxu0 %v307
  %v1593 = vpop.f32.mrb[0].mxu0
  %v1594 = vadd.f32 0.0, %v1593
  %v1595 = vpop.f32.mrb[0].mxu0
  %v1596 = vpop.f32.mrb[0].mxu0
  %v1597 = vadd.f32 0.0, %v1596
  %v1598 = vpop.f32.mrb[0].mxu0
  %1599 = vmatprep.mubr.bf16.mxu0 %v1152
  %1600 = vmatmul.mubr.bf16.gmra.mrb[0].mxu0 %v308
  %v1601 = vpop.f32.mrb[0].mxu0
  %v1602 = vadd.f32 0.0, %v1601
  %v1603 = vpop.f32.mrb[0].mxu0
  %v1604 = vpop.f32.mrb[0].mxu0
  %v1605 = vpop.f32.mrb[0].mxu0
  %1606 = vdwg.mxu0
  %v1607 = vadd.f32 %v1223, %v1227
  %v1608 = vadd.f32 %v1607, %v1233
  %v1609 = vadd.f32 %v1608, %v1237
  %v1610 = vadd.f32 %v1609, %v1243
  %v1611 = vadd.f32 %v1610, %v1247
  %vm1612 = vcmask 1040384
  %v1613 = vsel %vm1612, %v1253, 0.0
  %v1614 = vadd.f32 %v1611, %v1613
  %v1615 = vrot.slane %v1614, 4
  %v1616 = vadd.f32 %v1614, %v1615
  %v1617 = vrot.slane %v1616, 2
  %v1618 = vadd.f32 %v1616, %v1617
  %v1619 = vrot.slane %v1618, 1
  %v1620 = vadd.f32 %v1618, %v1619
  %v1621 = vadd.f32 %v1225, %v1229
  %v1622 = vadd.f32 %v1621, %v1235
  %v1623 = vadd.f32 %v1622, %v1239
  %v1624 = vadd.f32 %v1623, %v1245
  %v1625 = vadd.f32 %v1624, %v1249
  %v1626 = vsel %vm1612, %v1255, 0.0
  %v1627 = vadd.f32 %v1625, %v1626
  %v1628 = vrot.slane %v1627, 4
  %v1629 = vadd.f32 %v1627, %v1628
  %v1630 = vrot.slane %v1629, 2
  %v1631 = vadd.f32 %v1629, %v1630
  %v1632 = vrot.slane %v1631, 1
  %v1633 = vadd.f32 %v1631, %v1632
  %v1634 = vadd.f32 %v1294, %v1298
  %v1635 = vadd.f32 %v1634, %v1304
  %v1636 = vadd.f32 %v1635, %v1308
  %v1637 = vadd.f32 %v1636, %v1314
  %v1638 = vadd.f32 %v1637, %v1318
  %v1639 = vsel %vm1612, %v1324, 0.0
  %v1640 = vadd.f32 %v1638, %v1639
  %v1641 = vrot.slane %v1640, 4
  %v1642 = vadd.f32 %v1640, %v1641
  %v1643 = vrot.slane %v1642, 2
  %v1644 = vadd.f32 %v1642, %v1643
  %v1645 = vrot.slane %v1644, 1
  %v1646 = vadd.f32 %v1644, %v1645
  %v1647 = vadd.f32 %v1296, %v1300
  %v1648 = vadd.f32 %v1647, %v1306
  %v1649 = vadd.f32 %v1648, %v1310
  %v1650 = vadd.f32 %v1649, %v1316
  %v1651 = vadd.f32 %v1650, %v1320
  %v1652 = vsel %vm1612, %v1326, 0.0
  %v1653 = vadd.f32 %v1651, %v1652
  %v1654 = vrot.slane %v1653, 4
  %v1655 = vadd.f32 %v1653, %v1654
  %v1656 = vrot.slane %v1655, 2
  %v1657 = vadd.f32 %v1655, %v1656
  %v1658 = vrot.slane %v1657, 1
  %v1659 = vadd.f32 %v1657, %v1658
  %v1660 = vadd.f32 %v1365, %v1369
  %v1661 = vadd.f32 %v1660, %v1375
  %v1662 = vadd.f32 %v1661, %v1379
  %v1663 = vadd.f32 %v1662, %v1385
  %v1664 = vadd.f32 %v1663, %v1389
  %v1665 = vsel %vm1612, %v1395, 0.0
  %v1666 = vadd.f32 %v1664, %v1665
  %v1667 = vrot.slane %v1666, 4
  %v1668 = vadd.f32 %v1666, %v1667
  %v1669 = vrot.slane %v1668, 2
  %v1670 = vadd.f32 %v1668, %v1669
  %v1671 = vrot.slane %v1670, 1
  %v1672 = vadd.f32 %v1670, %v1671
  %v1673 = vadd.f32 %v1367, %v1371
  %v1674 = vadd.f32 %v1673, %v1377
  %v1675 = vadd.f32 %v1674, %v1381
  %v1676 = vadd.f32 %v1675, %v1387
  %v1677 = vadd.f32 %v1676, %v1391
  %v1678 = vsel %vm1612, %v1397, 0.0
  %v1679 = vadd.f32 %v1677, %v1678
  %v1680 = vrot.slane %v1679, 4
  %v1681 = vadd.f32 %v1679, %v1680
  %v1682 = vrot.slane %v1681, 2
  %v1683 = vadd.f32 %v1681, %v1682
  %v1684 = vrot.slane %v1683, 1
  %v1685 = vadd.f32 %v1683, %v1684
  %v1686 = vadd.f32 %v1436, %v1440
  %v1687 = vadd.f32 %v1686, %v1446
  %v1688 = vadd.f32 %v1687, %v1450
  %v1689 = vadd.f32 %v1688, %v1456
  %v1690 = vadd.f32 %v1689, %v1460
  %v1691 = vsel %vm1612, %v1466, 0.0
  %v1692 = vadd.f32 %v1690, %v1691
  %v1693 = vrot.slane %v1692, 4
  %v1694 = vadd.f32 %v1692, %v1693
  %v1695 = vrot.slane %v1694, 2
  %v1696 = vadd.f32 %v1694, %v1695
  %v1697 = vrot.slane %v1696, 1
  %v1698 = vadd.f32 %v1696, %v1697
  %v1699 = vadd.f32 %v1438, %v1442
  %v1700 = vadd.f32 %v1699, %v1448
  %v1701 = vadd.f32 %v1700, %v1452
  %v1702 = vadd.f32 %v1701, %v1458
  %v1703 = vadd.f32 %v1702, %v1462
  %v1704 = vsel %vm1612, %v1468, 0.0
  %v1705 = vadd.f32 %v1703, %v1704
  %v1706 = vrot.slane %v1705, 4
  %v1707 = vadd.f32 %v1705, %v1706
  %v1708 = vrot.slane %v1707, 2
  %v1709 = vadd.f32 %v1707, %v1708
  %v1710 = vrot.slane %v1709, 1
  %v1711 = vadd.f32 %v1709, %v1710
  %v1712 = vadd.f32 %v1507, %v1511
  %v1713 = vadd.f32 %v1712, %v1517
  %v1714 = vadd.f32 %v1713, %v1521
  %v1715 = vadd.f32 %v1714, %v1527
  %v1716 = vadd.f32 %v1715, %v1531
  %v1717 = vsel %vm1612, %v1537, 0.0
  %v1718 = vadd.f32 %v1716, %v1717
  %v1719 = vrot.slane %v1718, 4
  %v1720 = vadd.f32 %v1718, %v1719
  %v1721 = vrot.slane %v1720, 2
  %v1722 = vadd.f32 %v1720, %v1721
  %v1723 = vrot.slane %v1722, 1
  %v1724 = vadd.f32 %v1722, %v1723
  %v1725 = vadd.f32 %v1509, %v1513
  %v1726 = vadd.f32 %v1725, %v1519
  %v1727 = vadd.f32 %v1726, %v1523
  %v1728 = vadd.f32 %v1727, %v1529
  %v1729 = vadd.f32 %v1728, %v1533
  %v1730 = vsel %vm1612, %v1539, 0.0
  %v1731 = vadd.f32 %v1729, %v1730
  %v1732 = vrot.slane %v1731, 4
  %v1733 = vadd.f32 %v1731, %v1732
  %v1734 = vrot.slane %v1733, 2
  %v1735 = vadd.f32 %v1733, %v1734
  %v1736 = vrot.slane %v1735, 1
  %v1737 = vadd.f32 %v1735, %v1736
  %vm1738 = vcmask 916480
  %v1739 = vsel %vm1738, %v1578, 0.0
  %v1740 = vsel %vm1738, %v1581, 0.0
  %v1741 = vadd.f32 %v1739, %v1740
  %v1742 = vsel %vm1738, %v1586, 0.0
  %v1743 = vadd.f32 %v1741, %v1742
  %v1744 = vsel %vm1738, %v1589, 0.0
  %v1745 = vadd.f32 %v1743, %v1744
  %v1746 = vsel %vm1738, %v1594, 0.0
  %v1747 = vadd.f32 %v1745, %v1746
  %v1748 = vsel %vm1738, %v1597, 0.0
  %v1749 = vadd.f32 %v1747, %v1748
  %vm1750 = vcmask 909312
  %v1751 = vsel %vm1750, %v1602, 0.0
  %v1752 = vadd.f32 %v1749, %v1751
  %v1753 = vrot.slane %v1752, 4
  %v1754 = vadd.f32 %v1752, %v1753
  %v1755 = vrot.slane %v1754, 2
  %v1756 = vadd.f32 %v1754, %v1755
  %v1757 = vrot.slane %v1756, 1
  %v1758 = vadd.f32 %v1756, %v1757
  %v1759 = vmul.f32 %v1620, 0.020408163
  %v1760 = vmul.f32 %v1633, 0.020408163
  %v1761 = vmul.f32 %v1646, 0.020408163
  %v1762 = vmul.f32 %v1659, 0.020408163
  %v1763 = vmul.f32 %v1672, 0.020408163
  %v1764 = vmul.f32 %v1685, 0.020408163
  %v1765 = vmul.f32 %v1698, 0.020408163
  %v1766 = vmul.f32 %v1711, 0.020408163
  %v1767 = vmul.f32 %v1724, 0.020408163
  %v1768 = vmul.f32 %v1737, 0.020408163
  %v1769 = vmul.f32 %v1758, 0.020408163
  %v1770 = vsub.f32 %v1223, %v1759
  %v1771 = vsub.f32 %v1225, %v1760
  %v1772 = vsub.f32 %v1294, %v1761
  %v1773 = vsub.f32 %v1296, %v1762
  %v1774 = vsub.f32 %v1365, %v1763
  %v1775 = vsub.f32 %v1367, %v1764
  %v1776 = vsub.f32 %v1436, %v1765
  %v1777 = vsub.f32 %v1438, %v1766
  %v1778 = vsub.f32 %v1507, %v1767
  %v1779 = vsub.f32 %v1509, %v1768
  %v1780 = vsub.f32 %v1578, %v1769
  %v1781 = vsub.f32 %v1227, %v1759
  %v1782 = vsub.f32 %v1229, %v1760
  %v1783 = vsub.f32 %v1298, %v1761
  %v1784 = vsub.f32 %v1300, %v1762
  %v1785 = vsub.f32 %v1369, %v1763
  %v1786 = vsub.f32 %v1371, %v1764
  %v1787 = vsub.f32 %v1440, %v1765
  %v1788 = vsub.f32 %v1442, %v1766
  %v1789 = vsub.f32 %v1511, %v1767
  %v1790 = vsub.f32 %v1513, %v1768
  %v1791 = vsub.f32 %v1581, %v1769
  %v1792 = vsub.f32 %v1233, %v1759
  %v1793 = vsub.f32 %v1235, %v1760
  %v1794 = vsub.f32 %v1304, %v1761
  %v1795 = vsub.f32 %v1306, %v1762
  %v1796 = vsub.f32 %v1375, %v1763
  %v1797 = vsub.f32 %v1377, %v1764
  %v1798 = vsub.f32 %v1446, %v1765
  %v1799 = vsub.f32 %v1448, %v1766
  %v1800 = vsub.f32 %v1517, %v1767
  %v1801 = vsub.f32 %v1519, %v1768
  %v1802 = vsub.f32 %v1586, %v1769
  %v1803 = vsub.f32 %v1237, %v1759
  %v1804 = vsub.f32 %v1239, %v1760
  %v1805 = vsub.f32 %v1308, %v1761
  %v1806 = vsub.f32 %v1310, %v1762
  %v1807 = vsub.f32 %v1379, %v1763
  %v1808 = vsub.f32 %v1381, %v1764
  %v1809 = vsub.f32 %v1450, %v1765
  %v1810 = vsub.f32 %v1452, %v1766
  %v1811 = vsub.f32 %v1521, %v1767
  %v1812 = vsub.f32 %v1523, %v1768
  %v1813 = vsub.f32 %v1589, %v1769
  %v1814 = vsub.f32 %v1243, %v1759
  %v1815 = vsub.f32 %v1245, %v1760
  %v1816 = vsub.f32 %v1314, %v1761
  %v1817 = vsub.f32 %v1316, %v1762
  %v1818 = vsub.f32 %v1385, %v1763
  %v1819 = vsub.f32 %v1387, %v1764
  %v1820 = vsub.f32 %v1456, %v1765
  %v1821 = vsub.f32 %v1458, %v1766
  %v1822 = vsub.f32 %v1527, %v1767
  %v1823 = vsub.f32 %v1529, %v1768
  %v1824 = vsub.f32 %v1594, %v1769
  %v1825 = vsub.f32 %v1247, %v1759
  %v1826 = vsub.f32 %v1249, %v1760
  %v1827 = vsub.f32 %v1318, %v1761
  %v1828 = vsub.f32 %v1320, %v1762
  %v1829 = vsub.f32 %v1389, %v1763
  %v1830 = vsub.f32 %v1391, %v1764
  %v1831 = vsub.f32 %v1460, %v1765
  %v1832 = vsub.f32 %v1462, %v1766
  %v1833 = vsub.f32 %v1531, %v1767
  %v1834 = vsub.f32 %v1533, %v1768
  %v1835 = vsub.f32 %v1597, %v1769
  %v1836 = vsub.f32 %v1253, %v1759
  %v1837 = vsub.f32 %v1255, %v1760
  %v1838 = vsub.f32 %v1324, %v1761
  %v1839 = vsub.f32 %v1326, %v1762
  %v1840 = vsub.f32 %v1395, %v1763
  %v1841 = vsub.f32 %v1397, %v1764
  %v1842 = vsub.f32 %v1466, %v1765
  %v1843 = vsub.f32 %v1468, %v1766
  %v1844 = vsub.f32 %v1537, %v1767
  %v1845 = vsub.f32 %v1539, %v1768
  %v1846 = vsub.f32 %v1602, %v1769
  %v1847 = vmul.f32 %v1770, %v1770
  %v1848 = vmul.f32 %v1771, %v1771
  %v1849 = vmul.f32 %v1772, %v1772
  %v1850 = vmul.f32 %v1773, %v1773
  %v1851 = vmul.f32 %v1774, %v1774
  %v1852 = vmul.f32 %v1775, %v1775
  %v1853 = vmul.f32 %v1776, %v1776
  %v1854 = vmul.f32 %v1777, %v1777
  %v1855 = vmul.f32 %v1778, %v1778
  %v1856 = vmul.f32 %v1779, %v1779
  %v1857 = vmul.f32 %v1780, %v1780
  %v1858 = vmul.f32 %v1781, %v1781
  %v1859 = vmul.f32 %v1782, %v1782
  %v1860 = vmul.f32 %v1783, %v1783
  %v1861 = vmul.f32 %v1784, %v1784
  %v1862 = vmul.f32 %v1785, %v1785
  %v1863 = vmul.f32 %v1786, %v1786
  %v1864 = vmul.f32 %v1787, %v1787
  %v1865 = vmul.f32 %v1788, %v1788
  %v1866 = vmul.f32 %v1789, %v1789
  %v1867 = vmul.f32 %v1790, %v1790
  %v1868 = vmul.f32 %v1791, %v1791
  %v1869 = vmul.f32 %v1792, %v1792
  %v1870 = vmul.f32 %v1793, %v1793
  %v1871 = vmul.f32 %v1794, %v1794
  %v1872 = vmul.f32 %v1795, %v1795
  %v1873 = vmul.f32 %v1796, %v1796
  %v1874 = vmul.f32 %v1797, %v1797
  %v1875 = vmul.f32 %v1798, %v1798
  %v1876 = vmul.f32 %v1799, %v1799
  %v1877 = vmul.f32 %v1800, %v1800
  %v1878 = vmul.f32 %v1801, %v1801
  %v1879 = vmul.f32 %v1802, %v1802
  %v1880 = vmul.f32 %v1803, %v1803
  %v1881 = vmul.f32 %v1804, %v1804
  %v1882 = vmul.f32 %v1805, %v1805
  %v1883 = vmul.f32 %v1806, %v1806
  %v1884 = vmul.f32 %v1807, %v1807
  %v1885 = vmul.f32 %v1808, %v1808
  %v1886 = vmul.f32 %v1809, %v1809
  %v1887 = vmul.f32 %v1810, %v1810
  %v1888 = vmul.f32 %v1811, %v1811
  %v1889 = vmul.f32 %v1812, %v1812
  %v1890 = vmul.f32 %v1813, %v1813
  %v1891 = vmul.f32 %v1814, %v1814
  %v1892 = vmul.f32 %v1815, %v1815
  %v1893 = vmul.f32 %v1816, %v1816
  %v1894 = vmul.f32 %v1817, %v1817
  %v1895 = vmul.f32 %v1818, %v1818
  %v1896 = vmul.f32 %v1819, %v1819
  %v1897 = vmul.f32 %v1820, %v1820
  %v1898 = vmul.f32 %v1821, %v1821
  %v1899 = vmul.f32 %v1822, %v1822
  %v1900 = vmul.f32 %v1823, %v1823
  %v1901 = vmul.f32 %v1824, %v1824
  %v1902 = vmul.f32 %v1825, %v1825
  %v1903 = vmul.f32 %v1826, %v1826
  %v1904 = vmul.f32 %v1827, %v1827
  %v1905 = vmul.f32 %v1828, %v1828
  %v1906 = vmul.f32 %v1829, %v1829
  %v1907 = vmul.f32 %v1830, %v1830
  %v1908 = vmul.f32 %v1831, %v1831
  %v1909 = vmul.f32 %v1832, %v1832
  %v1910 = vmul.f32 %v1833, %v1833
  %v1911 = vmul.f32 %v1834, %v1834
  %v1912 = vmul.f32 %v1835, %v1835
  %v1913 = vmul.f32 %v1836, %v1836
  %v1914 = vmul.f32 %v1837, %v1837
  %v1915 = vmul.f32 %v1838, %v1838
  %v1916 = vmul.f32 %v1839, %v1839
  %v1917 = vmul.f32 %v1840, %v1840
  %v1918 = vmul.f32 %v1841, %v1841
  %v1919 = vmul.f32 %v1842, %v1842
  %v1920 = vmul.f32 %v1843, %v1843
  %v1921 = vmul.f32 %v1844, %v1844
  %v1922 = vmul.f32 %v1845, %v1845
  %v1923 = vmul.f32 %v1846, %v1846
  %v1924 = vadd.f32 %v1847, %v1858
  %v1925 = vadd.f32 %v1924, %v1869
  %v1926 = vadd.f32 %v1925, %v1880
  %v1927 = vadd.f32 %v1926, %v1891
  %v1928 = vadd.f32 %v1927, %v1902
  %v1929 = vsel %vm1612, %v1913, 0.0
  %v1930 = vadd.f32 %v1928, %v1929
  %v1931 = vrot.slane %v1930, 4
  %v1932 = vadd.f32 %v1930, %v1931
  %v1933 = vrot.slane %v1932, 2
  %v1934 = vadd.f32 %v1932, %v1933
  %v1935 = vrot.slane %v1934, 1
  %v1936 = vadd.f32 %v1934, %v1935
  %v1937 = vadd.f32 %v1848, %v1859
  %v1938 = vadd.f32 %v1937, %v1870
  %v1939 = vadd.f32 %v1938, %v1881
  %v1940 = vadd.f32 %v1939, %v1892
  %v1941 = vadd.f32 %v1940, %v1903
  %v1942 = vsel %vm1612, %v1914, 0.0
  %v1943 = vadd.f32 %v1941, %v1942
  %v1944 = vrot.slane %v1943, 4
  %v1945 = vadd.f32 %v1943, %v1944
  %v1946 = vrot.slane %v1945, 2
  %v1947 = vadd.f32 %v1945, %v1946
  %v1948 = vrot.slane %v1947, 1
  %v1949 = vadd.f32 %v1947, %v1948
  %v1950 = vadd.f32 %v1849, %v1860
  %v1951 = vadd.f32 %v1950, %v1871
  %v1952 = vadd.f32 %v1951, %v1882
  %v1953 = vadd.f32 %v1952, %v1893
  %v1954 = vadd.f32 %v1953, %v1904
  %v1955 = vsel %vm1612, %v1915, 0.0
  %v1956 = vadd.f32 %v1954, %v1955
  %v1957 = vrot.slane %v1956, 4
  %v1958 = vadd.f32 %v1956, %v1957
  %v1959 = vrot.slane %v1958, 2
  %v1960 = vadd.f32 %v1958, %v1959
  %v1961 = vrot.slane %v1960, 1
  %v1962 = vadd.f32 %v1960, %v1961
  %v1963 = vadd.f32 %v1850, %v1861
  %v1964 = vadd.f32 %v1963, %v1872
  %v1965 = vadd.f32 %v1964, %v1883
  %v1966 = vadd.f32 %v1965, %v1894
  %v1967 = vadd.f32 %v1966, %v1905
  %v1968 = vsel %vm1612, %v1916, 0.0
  %v1969 = vadd.f32 %v1967, %v1968
  %v1970 = vrot.slane %v1969, 4
  %v1971 = vadd.f32 %v1969, %v1970
  %v1972 = vrot.slane %v1971, 2
  %v1973 = vadd.f32 %v1971, %v1972
  %v1974 = vrot.slane %v1973, 1
  %v1975 = vadd.f32 %v1973, %v1974
  %v1976 = vadd.f32 %v1851, %v1862
  %v1977 = vadd.f32 %v1976, %v1873
  %v1978 = vadd.f32 %v1977, %v1884
  %v1979 = vadd.f32 %v1978, %v1895
  %v1980 = vadd.f32 %v1979, %v1906
  %v1981 = vsel %vm1612, %v1917, 0.0
  %v1982 = vadd.f32 %v1980, %v1981
  %v1983 = vrot.slane %v1982, 4
  %v1984 = vadd.f32 %v1982, %v1983
  %v1985 = vrot.slane %v1984, 2
  %v1986 = vadd.f32 %v1984, %v1985
  %v1987 = vrot.slane %v1986, 1
  %v1988 = vadd.f32 %v1986, %v1987
  %v1989 = vadd.f32 %v1852, %v1863
  %v1990 = vadd.f32 %v1989, %v1874
  %v1991 = vadd.f32 %v1990, %v1885
  %v1992 = vadd.f32 %v1991, %v1896
  %v1993 = vadd.f32 %v1992, %v1907
  %v1994 = vsel %vm1612, %v1918, 0.0
  %v1995 = vadd.f32 %v1993, %v1994
  %v1996 = vrot.slane %v1995, 4
  %v1997 = vadd.f32 %v1995, %v1996
  %v1998 = vrot.slane %v1997, 2
  %v1999 = vadd.f32 %v1997, %v1998
  %v2000 = vrot.slane %v1999, 1
  %v2001 = vadd.f32 %v1999, %v2000
  %v2002 = vadd.f32 %v1853, %v1864
  %v2003 = vadd.f32 %v2002, %v1875
  %v2004 = vadd.f32 %v2003, %v1886
  %v2005 = vadd.f32 %v2004, %v1897
  %v2006 = vadd.f32 %v2005, %v1908
  %v2007 = vsel %vm1612, %v1919, 0.0
  %v2008 = vadd.f32 %v2006, %v2007
  %v2009 = vrot.slane %v2008, 4
  %v2010 = vadd.f32 %v2008, %v2009
  %v2011 = vrot.slane %v2010, 2
  %v2012 = vadd.f32 %v2010, %v2011
  %v2013 = vrot.slane %v2012, 1
  %v2014 = vadd.f32 %v2012, %v2013
  %v2015 = vadd.f32 %v1854, %v1865
  %v2016 = vadd.f32 %v2015, %v1876
  %v2017 = vadd.f32 %v2016, %v1887
  %v2018 = vadd.f32 %v2017, %v1898
  %v2019 = vadd.f32 %v2018, %v1909
  %v2020 = vsel %vm1612, %v1920, 0.0
  %v2021 = vadd.f32 %v2019, %v2020
  %v2022 = vrot.slane %v2021, 4
  %v2023 = vadd.f32 %v2021, %v2022
  %v2024 = vrot.slane %v2023, 2
  %v2025 = vadd.f32 %v2023, %v2024
  %v2026 = vrot.slane %v2025, 1
  %v2027 = vadd.f32 %v2025, %v2026
  %v2028 = vadd.f32 %v1855, %v1866
  %v2029 = vadd.f32 %v2028, %v1877
  %v2030 = vadd.f32 %v2029, %v1888
  %v2031 = vadd.f32 %v2030, %v1899
  %v2032 = vadd.f32 %v2031, %v1910
  %v2033 = vsel %vm1612, %v1921, 0.0
  %v2034 = vadd.f32 %v2032, %v2033
  %v2035 = vrot.slane %v2034, 4
  %v2036 = vadd.f32 %v2034, %v2035
  %v2037 = vrot.slane %v2036, 2
  %v2038 = vadd.f32 %v2036, %v2037
  %v2039 = vrot.slane %v2038, 1
  %v2040 = vadd.f32 %v2038, %v2039
  %v2041 = vadd.f32 %v1856, %v1867
  %v2042 = vadd.f32 %v2041, %v1878
  %v2043 = vadd.f32 %v2042, %v1889
  %v2044 = vadd.f32 %v2043, %v1900
  %v2045 = vadd.f32 %v2044, %v1911
  %v2046 = vsel %vm1612, %v1922, 0.0
  %v2047 = vadd.f32 %v2045, %v2046
  %v2048 = vrot.slane %v2047, 4
  %v2049 = vadd.f32 %v2047, %v2048
  %v2050 = vrot.slane %v2049, 2
  %v2051 = vadd.f32 %v2049, %v2050
  %v2052 = vrot.slane %v2051, 1
  %v2053 = vadd.f32 %v2051, %v2052
  %v2054 = vsel %vm1738, %v1857, 0.0
  %v2055 = vsel %vm1738, %v1868, 0.0
  %v2056 = vadd.f32 %v2054, %v2055
  %v2057 = vsel %vm1738, %v1879, 0.0
  %v2058 = vadd.f32 %v2056, %v2057
  %v2059 = vsel %vm1738, %v1890, 0.0
  %v2060 = vadd.f32 %v2058, %v2059
  %v2061 = vsel %vm1738, %v1901, 0.0
  %v2062 = vadd.f32 %v2060, %v2061
  %v2063 = vsel %vm1738, %v1912, 0.0
  %v2064 = vadd.f32 %v2062, %v2063
  %v2065 = vsel %vm1750, %v1923, 0.0
  %v2066 = vadd.f32 %v2064, %v2065
  %v2067 = vrot.slane %v2066, 4
  %v2068 = vadd.f32 %v2066, %v2067
  %v2069 = vrot.slane %v2068, 2
  %v2070 = vadd.f32 %v2068, %v2069
  %v2071 = vrot.slane %v2070, 1
  %v2072 = vadd.f32 %v2070, %v2071
  %v2073 = vmul.f32 %v1936, 0.020408163
  %v2074 = vmul.f32 %v1949, 0.020408163
  %v2075 = vmul.f32 %v1962, 0.020408163
  %v2076 = vmul.f32 %v1975, 0.020408163
  %v2077 = vmul.f32 %v1988, 0.020408163
  %v2078 = vmul.f32 %v2001, 0.020408163
  %v2079 = vmul.f32 %v2014, 0.020408163
  %v2080 = vmul.f32 %v2027, 0.020408163
  %v2081 = vmul.f32 %v2040, 0.020408163
  %v2082 = vmul.f32 %v2053, 0.020408163
  %v2083 = vmul.f32 %v2072, 0.020408163
  %v2084 = vld [vmem:[%s3] sm:$0xff]
  %v2085 = vld [vmem:[%s3 + $0x8] sm:$0x7]
  %v2086 = vadd.f32 %v2073, 1e-05
  %v2087 = vadd.f32 %v2074, 1e-05
  %v2088 = vadd.f32 %v2075, 1e-05
  %v2089 = vadd.f32 %v2076, 1e-05
  %v2090 = vadd.f32 %v2077, 1e-05
  %v2091 = vadd.f32 %v2078, 1e-05
  %v2092 = vadd.f32 %v2079, 1e-05
  %v2093 = vadd.f32 %v2080, 1e-05
  %v2094 = vadd.f32 %v2081, 1e-05
  %v2095 = vadd.f32 %v2082, 1e-05
  %v2096 = vadd.f32 %v2083, 1e-05
  %v2097 = vrsqrt.pop %v2086
  %v2098 = vrsqrt.pop %v2087
  %v2099 = vrsqrt.pop %v2088
  %v2100 = vrsqrt.pop %v2089
  %v2101 = vrsqrt.pop %v2090
  %v2102 = vrsqrt.pop %v2091
  %v2103 = vrsqrt.pop %v2092
  %v2104 = vrsqrt.pop %v2093
  %v2105 = vrsqrt.pop %v2094
  %v2106 = vrsqrt.pop %v2095
  %v2107 = vrsqrt.pop %v2096
  %v2119 = vcombine.low %v2097, %v2098
  %v2120 = vcombine.low %v2099, %v2100
  %v2121 = vcombine.low %v2101, %v2102
  %v2122 = vcombine.low %v2103, %v2104
  %v2124 = vunpack.c.l.s4 1966171168
  %v2125 = vunpack.c.0.s8 %v2124
  %v2126 = vlaneseq
  %v2127 = vshrl.u32 %v2126, 7
  %v2128 = vsub.s32 %v2125, %v2127
  %v2129 = vrot.slane %v2119, %v2128
  %v2131 = vunpack.c.l.s4 1966171168
  %v2132 = vunpack.c.0.s8 %v2131
  %v2133 = vlaneseq
  %v2134 = vshrl.u32 %v2133, 7
  %v2135 = vsub.s32 %v2132, %v2134
  %v2136 = vrot.slane %v2120, %v2135
  %v2138 = vunpack.c.l.s4 1966171168
  %v2139 = vunpack.c.0.s8 %v2138
  %v2140 = vlaneseq
  %v2141 = vshrl.u32 %v2140, 7
  %v2142 = vsub.s32 %v2139, %v2141
  %v2143 = vrot.slane %v2121, %v2142
  %v2145 = vunpack.c.l.s4 1966171168
  %v2146 = vunpack.c.0.s8 %v2145
  %v2147 = vlaneseq
  %v2148 = vshrl.u32 %v2147, 7
  %v2149 = vsub.s32 %v2146, %v2148
  %v2150 = vrot.slane %v2122, %v2149
  %v2151 = vcombine.low %v2129, %v2136
  %v2152 = vcombine.low %v2143, %v2150
  %v2154 = vunpack.c.l.s4 1966171168
  %v2155 = vunpack.c.0.s8 %v2154
  %v2156 = vlaneseq
  %v2157 = vshrl.u32 %v2156, 7
  %v2158 = vsub.s32 %v2155, %v2157
  %v2159 = vrot.slane %v2151, %v2158
  %v2161 = vunpack.c.l.s4 1966171168
  %v2162 = vunpack.c.0.s8 %v2161
  %v2163 = vlaneseq
  %v2164 = vshrl.u32 %v2163, 7
  %v2165 = vsub.s32 %v2162, %v2164
  %v2166 = vrot.slane %v2152, %v2165
  %v2167 = vcombine.low %v2159, %v2166
  %v2168 = vcombine.low %v2105, %v2106
  %v2170 = vunpack.c.l.s4 1966171168
  %v2171 = vunpack.c.0.s8 %v2170
  %v2172 = vlaneseq
  %v2173 = vshrl.u32 %v2172, 7
  %v2174 = vsub.s32 %v2171, %v2173
  %v2175 = vrot.slane %v2168, %v2174
  %v2177 = vunpack.c.l.s4 1966171168
  %v2178 = vunpack.c.0.s8 %v2177
  %v2179 = vlaneseq
  %v2180 = vshrl.u32 %v2179, 7
  %v2181 = vsub.s32 %v2178, %v2180
  %v2182 = vrot.slane %v2107, %v2181
  %v2183 = vcombine.low %v2175, %v2182
  %v2185 = vunpack.c.l.s4 1966171168
  %v2186 = vunpack.c.0.s8 %v2185
  %v2187 = vlaneseq
  %v2188 = vshrl.u32 %v2187, 7
  %v2189 = vsub.s32 %v2186, %v2188
  %v2190 = vrot.slane %v2183, %v2189
  %v2193 = vmul.f32 %v2084, %v2167
  %v2194 = vmul.f32 %v2085, %v2190
  %v2197 = vlaneseq
  %v2198 = vshrl.u32 %v2197, 7
  %v2199 = vsub.s32 0, %v2198
  %v2200 = vrot.slane %v2193, %v2199
  %v2201 = vlaneseq
  %v2202 = vshrl.u32 %v2201, 7
  %v2203 = vsub.s32 1, %v2202
  %v2204 = vrot.slane %v2193, %v2203
  %v2205 = vlaneseq
  %v2206 = vshrl.u32 %v2205, 7
  %v2207 = vsub.s32 2, %v2206
  %v2208 = vrot.slane %v2193, %v2207
  %v2209 = vlaneseq
  %v2210 = vshrl.u32 %v2209, 7
  %v2211 = vsub.s32 3, %v2210
  %v2212 = vrot.slane %v2193, %v2211
  %v2213 = vlaneseq
  %v2214 = vshrl.u32 %v2213, 7
  %v2215 = vsub.s32 4, %v2214
  %v2216 = vrot.slane %v2193, %v2215
  %v2217 = vlaneseq
  %v2218 = vshrl.u32 %v2217, 7
  %v2219 = vsub.s32 5, %v2218
  %v2220 = vrot.slane %v2193, %v2219
  %v2221 = vlaneseq
  %v2222 = vshrl.u32 %v2221, 7
  %v2223 = vsub.s32 6, %v2222
  %v2224 = vrot.slane %v2193, %v2223
  %v2225 = vlaneseq
  %v2226 = vshrl.u32 %v2225, 7
  %v2227 = vsub.s32 7, %v2226
  %v2228 = vrot.slane %v2193, %v2227
  %v2229 = vlaneseq
  %v2230 = vshrl.u32 %v2229, 7
  %v2231 = vsub.s32 0, %v2230
  %v2232 = vrot.slane %v2194, %v2231
  %v2233 = vlaneseq
  %v2234 = vshrl.u32 %v2233, 7
  %v2235 = vsub.s32 1, %v2234
  %v2236 = vrot.slane %v2194, %v2235
  %v2237 = vlaneseq
  %v2238 = vshrl.u32 %v2237, 7
  %v2239 = vsub.s32 2, %v2238
  %v2240 = vrot.slane %v2194, %v2239
  %v2252 = vmul.f32 %v1770, %v2200
  %v2253 = vmul.f32 %v1771, %v2204
  %v2254 = vmul.f32 %v1772, %v2208
  %v2255 = vmul.f32 %v1773, %v2212
  %v2256 = vmul.f32 %v1774, %v2216
  %v2257 = vmul.f32 %v1775, %v2220
  %v2258 = vmul.f32 %v1776, %v2224
  %v2259 = vmul.f32 %v1777, %v2228
  %v2260 = vmul.f32 %v1778, %v2232
  %v2261 = vmul.f32 %v1779, %v2236
  %v2262 = vmul.f32 %v1780, %v2240
  %v2263 = vmul.f32 %v1781, %v2200
  %v2264 = vmul.f32 %v1782, %v2204
  %v2265 = vmul.f32 %v1783, %v2208
  %v2266 = vmul.f32 %v1784, %v2212
  %v2267 = vmul.f32 %v1785, %v2216
  %v2268 = vmul.f32 %v1786, %v2220
  %v2269 = vmul.f32 %v1787, %v2224
  %v2270 = vmul.f32 %v1788, %v2228
  %v2271 = vmul.f32 %v1789, %v2232
  %v2272 = vmul.f32 %v1790, %v2236
  %v2273 = vmul.f32 %v1791, %v2240
  %v2274 = vmul.f32 %v1792, %v2200
  %v2275 = vmul.f32 %v1793, %v2204
  %v2276 = vmul.f32 %v1794, %v2208
  %v2277 = vmul.f32 %v1795, %v2212
  %v2278 = vmul.f32 %v1796, %v2216
  %v2279 = vmul.f32 %v1797, %v2220
  %v2280 = vmul.f32 %v1798, %v2224
  %v2281 = vmul.f32 %v1799, %v2228
  %v2282 = vmul.f32 %v1800, %v2232
  %v2283 = vmul.f32 %v1801, %v2236
  %v2284 = vmul.f32 %v1802, %v2240
  %v2285 = vmul.f32 %v1803, %v2200
  %v2286 = vmul.f32 %v1804, %v2204
  %v2287 = vmul.f32 %v1805, %v2208
  %v2288 = vmul.f32 %v1806, %v2212
  %v2289 = vmul.f32 %v1807, %v2216
  %v2290 = vmul.f32 %v1808, %v2220
  %v2291 = vmul.f32 %v1809, %v2224
  %v2292 = vmul.f32 %v1810, %v2228
  %v2293 = vmul.f32 %v1811, %v2232
  %v2294 = vmul.f32 %v1812, %v2236
  %v2295 = vmul.f32 %v1813, %v2240
  %v2296 = vmul.f32 %v1814, %v2200
  %v2297 = vmul.f32 %v1815, %v2204
  %v2298 = vmul.f32 %v1816, %v2208
  %v2299 = vmul.f32 %v1817, %v2212
  %v2300 = vmul.f32 %v1818, %v2216
  %v2301 = vmul.f32 %v1819, %v2220
  %v2302 = vmul.f32 %v1820, %v2224
  %v2303 = vmul.f32 %v1821, %v2228
  %v2304 = vmul.f32 %v1822, %v2232
  %v2305 = vmul.f32 %v1823, %v2236
  %v2306 = vmul.f32 %v1824, %v2240
  %v2307 = vmul.f32 %v1825, %v2200
  %v2308 = vmul.f32 %v1826, %v2204
  %v2309 = vmul.f32 %v1827, %v2208
  %v2310 = vmul.f32 %v1828, %v2212
  %v2311 = vmul.f32 %v1829, %v2216
  %v2312 = vmul.f32 %v1830, %v2220
  %v2313 = vmul.f32 %v1831, %v2224
  %v2314 = vmul.f32 %v1832, %v2228
  %v2315 = vmul.f32 %v1833, %v2232
  %v2316 = vmul.f32 %v1834, %v2236
  %v2317 = vmul.f32 %v1835, %v2240
  %v2318 = vmul.f32 %v1836, %v2200
  %v2319 = vmul.f32 %v1837, %v2204
  %v2320 = vmul.f32 %v1838, %v2208
  %v2321 = vmul.f32 %v1839, %v2212
  %v2322 = vmul.f32 %v1840, %v2216
  %v2323 = vmul.f32 %v1841, %v2220
  %v2324 = vmul.f32 %v1842, %v2224
  %v2325 = vmul.f32 %v1843, %v2228
  %v2326 = vmul.f32 %v1844, %v2232
  %v2327 = vmul.f32 %v1845, %v2236
  %v2328 = vmul.f32 %v1846, %v2240
  %v2329 = vld [vmem:[%s4] sm:$0xff]
  %v2330 = vld [vmem:[%s4 + $0x8] sm:$0x7]
  %v2333 = vlaneseq
  %v2334 = vshrl.u32 %v2333, 7
  %v2335 = vsub.s32 0, %v2334
  %v2336 = vrot.slane %v2329, %v2335
  %v2337 = vlaneseq
  %v2338 = vshrl.u32 %v2337, 7
  %v2339 = vsub.s32 1, %v2338
  %v2340 = vrot.slane %v2329, %v2339
  %v2341 = vlaneseq
  %v2342 = vshrl.u32 %v2341, 7
  %v2343 = vsub.s32 2, %v2342
  %v2344 = vrot.slane %v2329, %v2343
  %v2345 = vlaneseq
  %v2346 = vshrl.u32 %v2345, 7
  %v2347 = vsub.s32 3, %v2346
  %v2348 = vrot.slane %v2329, %v2347
  %v2349 = vlaneseq
  %v2350 = vshrl.u32 %v2349, 7
  %v2351 = vsub.s32 4, %v2350
  %v2352 = vrot.slane %v2329, %v2351
  %v2353 = vlaneseq
  %v2354 = vshrl.u32 %v2353, 7
  %v2355 = vsub.s32 5, %v2354
  %v2356 = vrot.slane %v2329, %v2355
  %v2357 = vlaneseq
  %v2358 = vshrl.u32 %v2357, 7
  %v2359 = vsub.s32 6, %v2358
  %v2360 = vrot.slane %v2329, %v2359
  %v2361 = vlaneseq
  %v2362 = vshrl.u32 %v2361, 7
  %v2363 = vsub.s32 7, %v2362
  %v2364 = vrot.slane %v2329, %v2363
  %v2365 = vlaneseq
  %v2366 = vshrl.u32 %v2365, 7
  %v2367 = vsub.s32 0, %v2366
  %v2368 = vrot.slane %v2330, %v2367
  %v2369 = vlaneseq
  %v2370 = vshrl.u32 %v2369, 7
  %v2371 = vsub.s32 1, %v2370
  %v2372 = vrot.slane %v2330, %v2371
  %v2373 = vlaneseq
  %v2374 = vshrl.u32 %v2373, 7
  %v2375 = vsub.s32 2, %v2374
  %v2376 = vrot.slane %v2330, %v2375
  %v2388 = vadd.f32 %v2252, %v2336
  %v2389 = vadd.f32 %v2253, %v2340
  %v2390 = vadd.f32 %v2254, %v2344
  %v2391 = vadd.f32 %v2255, %v2348
  %v2392 = vadd.f32 %v2256, %v2352
  %v2393 = vadd.f32 %v2257, %v2356
  %v2394 = vadd.f32 %v2258, %v2360
  %v2395 = vadd.f32 %v2259, %v2364
  %v2396 = vadd.f32 %v2260, %v2368
  %v2397 = vadd.f32 %v2261, %v2372
  %v2398 = vadd.f32 %v2262, %v2376
  %v2399 = vadd.f32 %v2263, %v2336
  %v2400 = vadd.f32 %v2264, %v2340
  %v2401 = vadd.f32 %v2265, %v2344
  %v2402 = vadd.f32 %v2266, %v2348
  %v2403 = vadd.f32 %v2267, %v2352
  %v2404 = vadd.f32 %v2268, %v2356
  %v2405 = vadd.f32 %v2269, %v2360
  %v2406 = vadd.f32 %v2270, %v2364
  %v2407 = vadd.f32 %v2271, %v2368
  %v2408 = vadd.f32 %v2272, %v2372
  %v2409 = vadd.f32 %v2273, %v2376
  %v2410 = vadd.f32 %v2274, %v2336
  %v2411 = vadd.f32 %v2275, %v2340
  %v2412 = vadd.f32 %v2276, %v2344
  %v2413 = vadd.f32 %v2277, %v2348
  %v2414 = vadd.f32 %v2278, %v2352
  %v2415 = vadd.f32 %v2279, %v2356
  %v2416 = vadd.f32 %v2280, %v2360
  %v2417 = vadd.f32 %v2281, %v2364
  %v2418 = vadd.f32 %v2282, %v2368
  %v2419 = vadd.f32 %v2283, %v2372
  %v2420 = vadd.f32 %v2284, %v2376
  %v2421 = vadd.f32 %v2285, %v2336
  %v2422 = vadd.f32 %v2286, %v2340
  %v2423 = vadd.f32 %v2287, %v2344
  %v2424 = vadd.f32 %v2288, %v2348
  %v2425 = vadd.f32 %v2289, %v2352
  %v2426 = vadd.f32 %v2290, %v2356
  %v2427 = vadd.f32 %v2291, %v2360
  %v2428 = vadd.f32 %v2292, %v2364
  %v2429 = vadd.f32 %v2293, %v2368
  %v2430 = vadd.f32 %v2294, %v2372
  %v2431 = vadd.f32 %v2295, %v2376
  %v2432 = vadd.f32 %v2296, %v2336
  %v2433 = vadd.f32 %v2297, %v2340
  %v2434 = vadd.f32 %v2298, %v2344
  %v2435 = vadd.f32 %v2299, %v2348
  %v2436 = vadd.f32 %v2300, %v2352
  %v2437 = vadd.f32 %v2301, %v2356
  %v2438 = vadd.f32 %v2302, %v2360
  %v2439 = vadd.f32 %v2303, %v2364
  %v2440 = vadd.f32 %v2304, %v2368
  %v2441 = vadd.f32 %v2305, %v2372
  %v2442 = vadd.f32 %v2306, %v2376
  %v2443 = vadd.f32 %v2307, %v2336
  %v2444 = vadd.f32 %v2308, %v2340
  %v2445 = vadd.f32 %v2309, %v2344
  %v2446 = vadd.f32 %v2310, %v2348
  %v2447 = vadd.f32 %v2311, %v2352
  %v2448 = vadd.f32 %v2312, %v2356
  %v2449 = vadd.f32 %v2313, %v2360
  %v2450 = vadd.f32 %v2314, %v2364
  %v2451 = vadd.f32 %v2315, %v2368
  %v2452 = vadd.f32 %v2316, %v2372
  %v2453 = vadd.f32 %v2317, %v2376
  %v2454 = vadd.f32 %v2318, %v2336
  %v2455 = vadd.f32 %v2319, %v2340
  %v2456 = vadd.f32 %v2320, %v2344
  %v2457 = vadd.f32 %v2321, %v2348
  %v2458 = vadd.f32 %v2322, %v2352
  %v2459 = vadd.f32 %v2323, %v2356
  %v2460 = vadd.f32 %v2324, %v2360
  %v2461 = vadd.f32 %v2325, %v2364
  %v2462 = vadd.f32 %v2326, %v2368
  %v2463 = vadd.f32 %v2327, %v2372
  %v2464 = vadd.f32 %v2328, %v2376
  %2465 = vxpose.xlu0.b32.start [1/16] %v2388, 128
  %2466 = vxpose.xlu0.b32.cont [2/16] %v2399, 128
  %2467 = vxpose.xlu0.b32.cont [3/16] %v2410, 128
  %2468 = vxpose.xlu0.b32.cont [4/16] %v2421, 128
  %2469 = vxpose.xlu0.b32.cont [5/16] %v2432, 128
  %2470 = vxpose.xlu0.b32.cont [6/16] %v2443, 128
  %2471 = vxpose.xlu0.b32.cont [7/16] %v2454, 128
  %2472 = vxpose.xlu0.b32.cont [8/16] 0.0, 128
  %2473 = vxpose.xlu0.b32.cont [9/16] 0.0, 128
  %2474 = vxpose.xlu0.b32.cont [10/16] 0.0, 128
  %2475 = vxpose.xlu0.b32.cont [11/16] 0.0, 128
  %2476 = vxpose.xlu0.b32.cont [12/16] 0.0, 128
  %2477 = vxpose.xlu0.b32.cont [13/16] 0.0, 128
  %2478 = vxpose.xlu0.b32.cont [14/16] 0.0, 128
  %2479 = vxpose.xlu0.b32.cont [15/16] 0.0, 128
  %2480 = vxpose.xlu0.b32.end [16/16] 0.0, 128
  %v2481 = vpop.trf.xlu0
  %v2482 = vpop.trf.xlu0
  %v2483 = vpop.trf.xlu0
  %v2484 = vpop.trf.xlu0
  %v2485 = vpop.trf.xlu0
  %v2486 = vpop.trf.xlu0
  %v2487 = vpop.trf.xlu0
  %v2488 = vpop.trf.xlu0
  %v2489 = vpop.trf.xlu0
  %v2490 = vpop.trf.xlu0
  %v2491 = vpop.trf.xlu0
  %v2492 = vpop.trf.xlu0
  %v2493 = vpop.trf.xlu0
  %v2494 = vpop.trf.xlu0
  %v2495 = vpop.trf.xlu0
  %v2496 = vpop.trf.xlu0
  %2497 = vxpose.xlu0.b32.start [1/16] %v2389, 128
  %2498 = vxpose.xlu0.b32.cont [2/16] %v2400, 128
  %2499 = vxpose.xlu0.b32.cont [3/16] %v2411, 128
  %2500 = vxpose.xlu0.b32.cont [4/16] %v2422, 128
  %2501 = vxpose.xlu0.b32.cont [5/16] %v2433, 128
  %2502 = vxpose.xlu0.b32.cont [6/16] %v2444, 128
  %2503 = vxpose.xlu0.b32.cont [7/16] %v2455, 128
  %2504 = vxpose.xlu0.b32.cont [8/16] 0.0, 128
  %2505 = vxpose.xlu0.b32.cont [9/16] 0.0, 128
  %2506 = vxpose.xlu0.b32.cont [10/16] 0.0, 128
  %2507 = vxpose.xlu0.b32.cont [11/16] 0.0, 128
  %2508 = vxpose.xlu0.b32.cont [12/16] 0.0, 128
  %2509 = vxpose.xlu0.b32.cont [13/16] 0.0, 128
  %2510 = vxpose.xlu0.b32.cont [14/16] 0.0, 128
  %2511 = vxpose.xlu0.b32.cont [15/16] 0.0, 128
  %2512 = vxpose.xlu0.b32.end [16/16] 0.0, 128
  %v2513 = vpop.trf.xlu0
  %v2514 = vpop.trf.xlu0
  %v2515 = vpop.trf.xlu0
  %v2516 = vpop.trf.xlu0
  %v2517 = vpop.trf.xlu0
  %v2518 = vpop.trf.xlu0
  %v2519 = vpop.trf.xlu0
  %v2520 = vpop.trf.xlu0
  %v2521 = vpop.trf.xlu0
  %v2522 = vpop.trf.xlu0
  %v2523 = vpop.trf.xlu0
  %v2524 = vpop.trf.xlu0
  %v2525 = vpop.trf.xlu0
  %v2526 = vpop.trf.xlu0
  %v2527 = vpop.trf.xlu0
  %v2528 = vpop.trf.xlu0
  %2529 = vxpose.xlu0.b32.start [1/16] %v2390, 128
  %2530 = vxpose.xlu0.b32.cont [2/16] %v2401, 128
  %2531 = vxpose.xlu0.b32.cont [3/16] %v2412, 128
  %2532 = vxpose.xlu0.b32.cont [4/16] %v2423, 128
  %2533 = vxpose.xlu0.b32.cont [5/16] %v2434, 128
  %2534 = vxpose.xlu0.b32.cont [6/16] %v2445, 128
  %2535 = vxpose.xlu0.b32.cont [7/16] %v2456, 128
  %2536 = vxpose.xlu0.b32.cont [8/16] 0.0, 128
  %2537 = vxpose.xlu0.b32.cont [9/16] 0.0, 128
  %2538 = vxpose.xlu0.b32.cont [10/16] 0.0, 128
  %2539 = vxpose.xlu0.b32.cont [11/16] 0.0, 128
  %2540 = vxpose.xlu0.b32.cont [12/16] 0.0, 128
  %2541 = vxpose.xlu0.b32.cont [13/16] 0.0, 128
  %2542 = vxpose.xlu0.b32.cont [14/16] 0.0, 128
  %2543 = vxpose.xlu0.b32.cont [15/16] 0.0, 128
  %2544 = vxpose.xlu0.b32.end [16/16] 0.0, 128
  %v2545 = vpop.trf.xlu0
  %v2546 = vpop.trf.xlu0
  %v2547 = vpop.trf.xlu0
  %v2548 = vpop.trf.xlu0
  %v2549 = vpop.trf.xlu0
  %v2550 = vpop.trf.xlu0
  %v2551 = vpop.trf.xlu0
  %v2552 = vpop.trf.xlu0
  %v2553 = vpop.trf.xlu0
  %v2554 = vpop.trf.xlu0
  %v2555 = vpop.trf.xlu0
  %v2556 = vpop.trf.xlu0
  %v2557 = vpop.trf.xlu0
  %v2558 = vpop.trf.xlu0
  %v2559 = vpop.trf.xlu0
  %v2560 = vpop.trf.xlu0
  %2561 = vxpose.xlu0.b32.start [1/16] %v2391, 128
  %2562 = vxpose.xlu0.b32.cont [2/16] %v2402, 128
  %2563 = vxpose.xlu0.b32.cont [3/16] %v2413, 128
  %2564 = vxpose.xlu0.b32.cont [4/16] %v2424, 128
  %2565 = vxpose.xlu0.b32.cont [5/16] %v2435, 128
  %2566 = vxpose.xlu0.b32.cont [6/16] %v2446, 128
  %2567 = vxpose.xlu0.b32.cont [7/16] %v2457, 128
  %2568 = vxpose.xlu0.b32.cont [8/16] 0.0, 128
  %2569 = vxpose.xlu0.b32.cont [9/16] 0.0, 128
  %2570 = vxpose.xlu0.b32.cont [10/16] 0.0, 128
  %2571 = vxpose.xlu0.b32.cont [11/16] 0.0, 128
  %2572 = vxpose.xlu0.b32.cont [12/16] 0.0, 128
  %2573 = vxpose.xlu0.b32.cont [13/16] 0.0, 128
  %2574 = vxpose.xlu0.b32.cont [14/16] 0.0, 128
  %2575 = vxpose.xlu0.b32.cont [15/16] 0.0, 128
  %2576 = vxpose.xlu0.b32.end [16/16] 0.0, 128
  %v2577 = vpop.trf.xlu0
  %v2578 = vpop.trf.xlu0
  %v2579 = vpop.trf.xlu0
  %v2580 = vpop.trf.xlu0
  %v2581 = vpop.trf.xlu0
  %v2582 = vpop.trf.xlu0
  %v2583 = vpop.trf.xlu0
  %v2584 = vpop.trf.xlu0
  %v2585 = vpop.trf.xlu0
  %v2586 = vpop.trf.xlu0
  %v2587 = vpop.trf.xlu0
  %v2588 = vpop.trf.xlu0
  %v2589 = vpop.trf.xlu0
  %v2590 = vpop.trf.xlu0
  %v2591 = vpop.trf.xlu0
  %v2592 = vpop.trf.xlu0
  %2593 = vxpose.xlu0.b32.start [1/16] %v2392, 128
  %2594 = vxpose.xlu0.b32.cont [2/16] %v2403, 128
  %2595 = vxpose.xlu0.b32.cont [3/16] %v2414, 128
  %2596 = vxpose.xlu0.b32.cont [4/16] %v2425, 128
  %2597 = vxpose.xlu0.b32.cont [5/16] %v2436, 128
  %2598 = vxpose.xlu0.b32.cont [6/16] %v2447, 128
  %2599 = vxpose.xlu0.b32.cont [7/16] %v2458, 128
  %2600 = vxpose.xlu0.b32.cont [8/16] 0.0, 128
  %2601 = vxpose.xlu0.b32.cont [9/16] 0.0, 128
  %2602 = vxpose.xlu0.b32.cont [10/16] 0.0, 128
  %2603 = vxpose.xlu0.b32.cont [11/16] 0.0, 128
  %2604 = vxpose.xlu0.b32.cont [12/16] 0.0, 128
  %2605 = vxpose.xlu0.b32.cont [13/16] 0.0, 128
  %2606 = vxpose.xlu0.b32.cont [14/16] 0.0, 128
  %2607 = vxpose.xlu0.b32.cont [15/16] 0.0, 128
  %2608 = vxpose.xlu0.b32.end [16/16] 0.0, 128
  %v2609 = vpop.trf.xlu0
  %v2610 = vpop.trf.xlu0
  %v2611 = vpop.trf.xlu0
  %v2612 = vpop.trf.xlu0
  %v2613 = vpop.trf.xlu0
  %v2614 = vpop.trf.xlu0
  %v2615 = vpop.trf.xlu0
  %v2616 = vpop.trf.xlu0
  %v2617 = vpop.trf.xlu0
  %v2618 = vpop.trf.xlu0
  %v2619 = vpop.trf.xlu0
  %v2620 = vpop.trf.xlu0
  %v2621 = vpop.trf.xlu0
  %v2622 = vpop.trf.xlu0
  %v2623 = vpop.trf.xlu0
  %v2624 = vpop.trf.xlu0
  %2625 = vxpose.xlu0.b32.start [1/16] %v2393, 128
  %2626 = vxpose.xlu0.b32.cont [2/16] %v2404, 128
  %2627 = vxpose.xlu0.b32.cont [3/16] %v2415, 128
  %2628 = vxpose.xlu0.b32.cont [4/16] %v2426, 128
  %2629 = vxpose.xlu0.b32.cont [5/16] %v2437, 128
  %2630 = vxpose.xlu0.b32.cont [6/16] %v2448, 128
  %2631 = vxpose.xlu0.b32.cont [7/16] %v2459, 128
  %2632 = vxpose.xlu0.b32.cont [8/16] 0.0, 128
  %2633 = vxpose.xlu0.b32.cont [9/16] 0.0, 128
  %2634 = vxpose.xlu0.b32.cont [10/16] 0.0, 128
  %2635 = vxpose.xlu0.b32.cont [11/16] 0.0, 128
  %2636 = vxpose.xlu0.b32.cont [12/16] 0.0, 128
  %2637 = vxpose.xlu0.b32.cont [13/16] 0.0, 128
  %2638 = vxpose.xlu0.b32.cont [14/16] 0.0, 128
  %2639 = vxpose.xlu0.b32.cont [15/16] 0.0, 128
  %2640 = vxpose.xlu0.b32.end [16/16] 0.0, 128
  %v2641 = vpop.trf.xlu0
  %v2642 = vpop.trf.xlu0
  %v2643 = vpop.trf.xlu0
  %v2644 = vpop.trf.xlu0
  %v2645 = vpop.trf.xlu0
  %v2646 = vpop.trf.xlu0
  %v2647 = vpop.trf.xlu0
  %v2648 = vpop.trf.xlu0
  %v2649 = vpop.trf.xlu0
  %v2650 = vpop.trf.xlu0
  %v2651 = vpop.trf.xlu0
  %v2652 = vpop.trf.xlu0
  %v2653 = vpop.trf.xlu0
  %v2654 = vpop.trf.xlu0
  %v2655 = vpop.trf.xlu0
  %v2656 = vpop.trf.xlu0
  %2657 = vxpose.xlu0.b32.start [1/16] %v2394, 128
  %2658 = vxpose.xlu0.b32.cont [2/16] %v2405, 128
  %2659 = vxpose.xlu0.b32.cont [3/16] %v2416, 128
  %2660 = vxpose.xlu0.b32.cont [4/16] %v2427, 128
  %2661 = vxpose.xlu0.b32.cont [5/16] %v2438, 128
  %2662 = vxpose.xlu0.b32.cont [6/16] %v2449, 128
  %2663 = vxpose.xlu0.b32.cont [7/16] %v2460, 128
  %2664 = vxpose.xlu0.b32.cont [8/16] 0.0, 128
  %2665 = vxpose.xlu0.b32.cont [9/16] 0.0, 128
  %2666 = vxpose.xlu0.b32.cont [10/16] 0.0, 128
  %2667 = vxpose.xlu0.b32.cont [11/16] 0.0, 128
  %2668 = vxpose.xlu0.b32.cont [12/16] 0.0, 128
  %2669 = vxpose.xlu0.b32.cont [13/16] 0.0, 128
  %2670 = vxpose.xlu0.b32.cont [14/16] 0.0, 128
  %2671 = vxpose.xlu0.b32.cont [15/16] 0.0, 128
  %2672 = vxpose.xlu0.b32.end [16/16] 0.0, 128
  %v2673 = vpop.trf.xlu0
  %v2674 = vpop.trf.xlu0
  %v2675 = vpop.trf.xlu0
  %v2676 = vpop.trf.xlu0
  %v2677 = vpop.trf.xlu0
  %v2678 = vpop.trf.xlu0
  %v2679 = vpop.trf.xlu0
  %v2680 = vpop.trf.xlu0
  %v2681 = vpop.trf.xlu0
  %v2682 = vpop.trf.xlu0
  %v2683 = vpop.trf.xlu0
  %v2684 = vpop.trf.xlu0
  %v2685 = vpop.trf.xlu0
  %v2686 = vpop.trf.xlu0
  %v2687 = vpop.trf.xlu0
  %v2688 = vpop.trf.xlu0
  %2689 = vxpose.xlu0.b32.start [1/16] %v2395, 128
  %2690 = vxpose.xlu0.b32.cont [2/16] %v2406, 128
  %2691 = vxpose.xlu0.b32.cont [3/16] %v2417, 128
  %2692 = vxpose.xlu0.b32.cont [4/16] %v2428, 128
  %2693 = vxpose.xlu0.b32.cont [5/16] %v2439, 128
  %2694 = vxpose.xlu0.b32.cont [6/16] %v2450, 128
  %2695 = vxpose.xlu0.b32.cont [7/16] %v2461, 128
  %2696 = vxpose.xlu0.b32.cont [8/16] 0.0, 128
  %2697 = vxpose.xlu0.b32.cont [9/16] 0.0, 128
  %2698 = vxpose.xlu0.b32.cont [10/16] 0.0, 128
  %2699 = vxpose.xlu0.b32.cont [11/16] 0.0, 128
  %2700 = vxpose.xlu0.b32.cont [12/16] 0.0, 128
  %2701 = vxpose.xlu0.b32.cont [13/16] 0.0, 128
  %2702 = vxpose.xlu0.b32.cont [14/16] 0.0, 128
  %2703 = vxpose.xlu0.b32.cont [15/16] 0.0, 128
  %2704 = vxpose.xlu0.b32.end [16/16] 0.0, 128
  %v2705 = vpop.trf.xlu0
  %v2706 = vpop.trf.xlu0
  %v2707 = vpop.trf.xlu0
  %v2708 = vpop.trf.xlu0
  %v2709 = vpop.trf.xlu0
  %v2710 = vpop.trf.xlu0
  %v2711 = vpop.trf.xlu0
  %v2712 = vpop.trf.xlu0
  %v2713 = vpop.trf.xlu0
  %v2714 = vpop.trf.xlu0
  %v2715 = vpop.trf.xlu0
  %v2716 = vpop.trf.xlu0
  %v2717 = vpop.trf.xlu0
  %v2718 = vpop.trf.xlu0
  %v2719 = vpop.trf.xlu0
  %v2720 = vpop.trf.xlu0
  %2721 = vxpose.xlu0.b32.start [1/16] %v2396, 128
  %2722 = vxpose.xlu0.b32.cont [2/16] %v2407, 128
  %2723 = vxpose.xlu0.b32.cont [3/16] %v2418, 128
  %2724 = vxpose.xlu0.b32.cont [4/16] %v2429, 128
  %2725 = vxpose.xlu0.b32.cont [5/16] %v2440, 128
  %2726 = vxpose.xlu0.b32.cont [6/16] %v2451, 128
  %2727 = vxpose.xlu0.b32.cont [7/16] %v2462, 128
  %2728 = vxpose.xlu0.b32.cont [8/16] 0.0, 128
  %2729 = vxpose.xlu0.b32.cont [9/16] 0.0, 128
  %2730 = vxpose.xlu0.b32.cont [10/16] 0.0, 128
  %2731 = vxpose.xlu0.b32.cont [11/16] 0.0, 128
  %2732 = vxpose.xlu0.b32.cont [12/16] 0.0, 128
  %2733 = vxpose.xlu0.b32.cont [13/16] 0.0, 128
  %2734 = vxpose.xlu0.b32.cont [14/16] 0.0, 128
  %2735 = vxpose.xlu0.b32.cont [15/16] 0.0, 128
  %2736 = vxpose.xlu0.b32.end [16/16] 0.0, 128
  %v2737 = vpop.trf.xlu0
  %v2738 = vpop.trf.xlu0
  %v2739 = vpop.trf.xlu0
  %v2740 = vpop.trf.xlu0
  %v2741 = vpop.trf.xlu0
  %v2742 = vpop.trf.xlu0
  %v2743 = vpop.trf.xlu0
  %v2744 = vpop.trf.xlu0
  %v2745 = vpop.trf.xlu0
  %v2746 = vpop.trf.xlu0
  %v2747 = vpop.trf.xlu0
  %v2748 = vpop.trf.xlu0
  %v2749 = vpop.trf.xlu0
  %v2750 = vpop.trf.xlu0
  %v2751 = vpop.trf.xlu0
  %v2752 = vpop.trf.xlu0
  %2753 = vxpose.xlu0.b32.start [1/16] %v2397, 128
  %2754 = vxpose.xlu0.b32.cont [2/16] %v2408, 128
  %2755 = vxpose.xlu0.b32.cont [3/16] %v2419, 128
  %2756 = vxpose.xlu0.b32.cont [4/16] %v2430, 128
  %2757 = vxpose.xlu0.b32.cont [5/16] %v2441, 128
  %2758 = vxpose.xlu0.b32.cont [6/16] %v2452, 128
  %2759 = vxpose.xlu0.b32.cont [7/16] %v2463, 128
  %2760 = vxpose.xlu0.b32.cont [8/16] 0.0, 128
  %2761 = vxpose.xlu0.b32.cont [9/16] 0.0, 128
  %2762 = vxpose.xlu0.b32.cont [10/16] 0.0, 128
  %2763 = vxpose.xlu0.b32.cont [11/16] 0.0, 128
  %2764 = vxpose.xlu0.b32.cont [12/16] 0.0, 128
  %2765 = vxpose.xlu0.b32.cont [13/16] 0.0, 128
  %2766 = vxpose.xlu0.b32.cont [14/16] 0.0, 128
  %2767 = vxpose.xlu0.b32.cont [15/16] 0.0, 128
  %2768 = vxpose.xlu0.b32.end [16/16] 0.0, 128
  %v2769 = vpop.trf.xlu0
  %v2770 = vpop.trf.xlu0
  %v2771 = vpop.trf.xlu0
  %v2772 = vpop.trf.xlu0
  %v2773 = vpop.trf.xlu0
  %v2774 = vpop.trf.xlu0
  %v2775 = vpop.trf.xlu0
  %v2776 = vpop.trf.xlu0
  %v2777 = vpop.trf.xlu0
  %v2778 = vpop.trf.xlu0
  %v2779 = vpop.trf.xlu0
  %v2780 = vpop.trf.xlu0
  %v2781 = vpop.trf.xlu0
  %v2782 = vpop.trf.xlu0
  %v2783 = vpop.trf.xlu0
  %v2784 = vpop.trf.xlu0
  %2785 = vxpose.xlu0.b32.start [1/16] %v2398, 128
  %2786 = vxpose.xlu0.b32.cont [2/16] %v2409, 128
  %2787 = vxpose.xlu0.b32.cont [3/16] %v2420, 128
  %2788 = vxpose.xlu0.b32.cont [4/16] %v2431, 128
  %2789 = vxpose.xlu0.b32.cont [5/16] %v2442, 128
  %2790 = vxpose.xlu0.b32.cont [6/16] %v2453, 128
  %2791 = vxpose.xlu0.b32.cont [7/16] %v2464, 128
  %2792 = vxpose.xlu0.b32.cont [8/16] 0.0, 128
  %2793 = vxpose.xlu0.b32.cont [9/16] 0.0, 128
  %2794 = vxpose.xlu0.b32.cont [10/16] 0.0, 128
  %2795 = vxpose.xlu0.b32.cont [11/16] 0.0, 128
  %2796 = vxpose.xlu0.b32.cont [12/16] 0.0, 128
  %2797 = vxpose.xlu0.b32.cont [13/16] 0.0, 128
  %2798 = vxpose.xlu0.b32.cont [14/16] 0.0, 128
  %2799 = vxpose.xlu0.b32.cont [15/16] 0.0, 128
  %2800 = vxpose.xlu0.b32.end [16/16] 0.0, 128
  %v2801 = vpop.trf.xlu0
  %v2802 = vpop.trf.xlu0
  %v2803 = vpop.trf.xlu0
  %v2804 = vpop.trf.xlu0
  %v2805 = vpop.trf.xlu0
  %v2806 = vpop.trf.xlu0
  %v2807 = vpop.trf.xlu0
  %v2808 = vpop.trf.xlu0
  %v2809 = vpop.trf.xlu0
  %v2810 = vpop.trf.xlu0
  %v2811 = vpop.trf.xlu0
  %v2812 = vpop.trf.xlu0
  %v2813 = vpop.trf.xlu0
  %v2814 = vpop.trf.xlu0
  %v2815 = vpop.trf.xlu0
  %v2816 = vpop.trf.xlu0
  %vm2817 = vcmask 400384
  %2818 = vst.msk [vmem:[%s5] sm:$0xff] %vm2817, %v2481
  %2819 = vst.msk [vmem:[%s5 + $0x8] sm:$0xff] %vm2817, %v2482
  %2820 = vst.msk [vmem:[%s5 + $0x10] sm:$0xff] %vm2817, %v2483
  %2821 = vst.msk [vmem:[%s5 + $0x18] sm:$0xff] %vm2817, %v2484
  %2822 = vst.msk [vmem:[%s5 + $0x20] sm:$0xff] %vm2817, %v2485
  %2823 = vst.msk [vmem:[%s5 + $0x28] sm:$0xff] %vm2817, %v2486
  %2824 = vst.msk [vmem:[%s5 + $0x30] sm:$0xff] %vm2817, %v2487
  %2825 = vst.msk [vmem:[%s5 + $0x38] sm:$0xff] %vm2817, %v2488
  %2826 = vst.msk [vmem:[%s5 + $0x40] sm:$0xff] %vm2817, %v2489
  %2827 = vst.msk [vmem:[%s5 + $0x48] sm:$0xff] %vm2817, %v2490
  %2828 = vst.msk [vmem:[%s5 + $0x50] sm:$0xff] %vm2817, %v2491
  %2829 = vst.msk [vmem:[%s5 + $0x58] sm:$0xff] %vm2817, %v2492
  %2830 = vst.msk [vmem:[%s5 + $0x60] sm:$0xff] %vm2817, %v2493
  %2831 = vst.msk [vmem:[%s5 + $0x68] sm:$0xff] %vm2817, %v2494
  %2832 = vst.msk [vmem:[%s5 + $0x70] sm:$0xff] %vm2817, %v2495
  %2833 = vst.msk [vmem:[%s5 + $0x78] sm:$0xff] %vm2817, %v2496
  %2834 = vst.msk [vmem:[%s5 + $0x80] sm:$0xff] %vm2817, %v2513
  %2835 = vst.msk [vmem:[%s5 + $0x88] sm:$0xff] %vm2817, %v2514
  %2836 = vst.msk [vmem:[%s5 + $0x90] sm:$0xff] %vm2817, %v2515
  %2837 = vst.msk [vmem:[%s5 + $0x98] sm:$0xff] %vm2817, %v2516
  %2838 = vst.msk [vmem:[%s5 + $0xa0] sm:$0xff] %vm2817, %v2517
  %2839 = vst.msk [vmem:[%s5 + $0xa8] sm:$0xff] %vm2817, %v2518
  %2840 = vst.msk [vmem:[%s5 + $0xb0] sm:$0xff] %vm2817, %v2519
  %2841 = vst.msk [vmem:[%s5 + $0xb8] sm:$0xff] %vm2817, %v2520
  %2842 = vst.msk [vmem:[%s5 + $0xc0] sm:$0xff] %vm2817, %v2521
  %2843 = vst.msk [vmem:[%s5 + $0xc8] sm:$0xff] %vm2817, %v2522
  %2844 = vst.msk [vmem:[%s5 + $0xd0] sm:$0xff] %vm2817, %v2523
  %2845 = vst.msk [vmem:[%s5 + $0xd8] sm:$0xff] %vm2817, %v2524
  %2846 = vst.msk [vmem:[%s5 + $0xe0] sm:$0xff] %vm2817, %v2525
  %2847 = vst.msk [vmem:[%s5 + $0xe8] sm:$0xff] %vm2817, %v2526
  %2848 = vst.msk [vmem:[%s5 + $0xf0] sm:$0xff] %vm2817, %v2527
  %2849 = vst.msk [vmem:[%s5 + $0xf8] sm:$0xff] %vm2817, %v2528
  %2850 = vst.msk [vmem:[%s5 + $0x100] sm:$0xff] %vm2817, %v2545
  %2851 = vst.msk [vmem:[%s5 + $0x108] sm:$0xff] %vm2817, %v2546
  %2852 = vst.msk [vmem:[%s5 + $0x110] sm:$0xff] %vm2817, %v2547
  %2853 = vst.msk [vmem:[%s5 + $0x118] sm:$0xff] %vm2817, %v2548
  %2854 = vst.msk [vmem:[%s5 + $0x120] sm:$0xff] %vm2817, %v2549
  %2855 = vst.msk [vmem:[%s5 + $0x128] sm:$0xff] %vm2817, %v2550
  %2856 = vst.msk [vmem:[%s5 + $0x130] sm:$0xff] %vm2817, %v2551
  %2857 = vst.msk [vmem:[%s5 + $0x138] sm:$0xff] %vm2817, %v2552
  %2858 = vst.msk [vmem:[%s5 + $0x140] sm:$0xff] %vm2817, %v2553
  %2859 = vst.msk [vmem:[%s5 + $0x148] sm:$0xff] %vm2817, %v2554
  %2860 = vst.msk [vmem:[%s5 + $0x150] sm:$0xff] %vm2817, %v2555
  %2861 = vst.msk [vmem:[%s5 + $0x158] sm:$0xff] %vm2817, %v2556
  %2862 = vst.msk [vmem:[%s5 + $0x160] sm:$0xff] %vm2817, %v2557
  %2863 = vst.msk [vmem:[%s5 + $0x168] sm:$0xff] %vm2817, %v2558
  %2864 = vst.msk [vmem:[%s5 + $0x170] sm:$0xff] %vm2817, %v2559
  %2865 = vst.msk [vmem:[%s5 + $0x178] sm:$0xff] %vm2817, %v2560
  %2866 = vst.msk [vmem:[%s5 + $0x180] sm:$0xff] %vm2817, %v2577
  %2867 = vst.msk [vmem:[%s5 + $0x188] sm:$0xff] %vm2817, %v2578
  %2868 = vst.msk [vmem:[%s5 + $0x190] sm:$0xff] %vm2817, %v2579
  %2869 = vst.msk [vmem:[%s5 + $0x198] sm:$0xff] %vm2817, %v2580
  %2870 = vst.msk [vmem:[%s5 + $0x1a0] sm:$0xff] %vm2817, %v2581
  %2871 = vst.msk [vmem:[%s5 + $0x1a8] sm:$0xff] %vm2817, %v2582
  %2872 = vst.msk [vmem:[%s5 + $0x1b0] sm:$0xff] %vm2817, %v2583
  %2873 = vst.msk [vmem:[%s5 + $0x1b8] sm:$0xff] %vm2817, %v2584
  %2874 = vst.msk [vmem:[%s5 + $0x1c0] sm:$0xff] %vm2817, %v2585
  %2875 = vst.msk [vmem:[%s5 + $0x1c8] sm:$0xff] %vm2817, %v2586
  %2876 = vst.msk [vmem:[%s5 + $0x1d0] sm:$0xff] %vm2817, %v2587
  %2877 = vst.msk [vmem:[%s5 + $0x1d8] sm:$0xff] %vm2817, %v2588
  %2878 = vst.msk [vmem:[%s5 + $0x1e0] sm:$0xff] %vm2817, %v2589
  %2879 = vst.msk [vmem:[%s5 + $0x1e8] sm:$0xff] %vm2817, %v2590
  %2880 = vst.msk [vmem:[%s5 + $0x1f0] sm:$0xff] %vm2817, %v2591
  %2881 = vst.msk [vmem:[%s5 + $0x1f8] sm:$0xff] %vm2817, %v2592
  %2882 = vst.msk [vmem:[%s5 + $0x200] sm:$0xff] %vm2817, %v2609
  %2883 = vst.msk [vmem:[%s5 + $0x208] sm:$0xff] %vm2817, %v2610
  %2884 = vst.msk [vmem:[%s5 + $0x210] sm:$0xff] %vm2817, %v2611
  %2885 = vst.msk [vmem:[%s5 + $0x218] sm:$0xff] %vm2817, %v2612
  %2886 = vst.msk [vmem:[%s5 + $0x220] sm:$0xff] %vm2817, %v2613
  %2887 = vst.msk [vmem:[%s5 + $0x228] sm:$0xff] %vm2817, %v2614
  %2888 = vst.msk [vmem:[%s5 + $0x230] sm:$0xff] %vm2817, %v2615
  %2889 = vst.msk [vmem:[%s5 + $0x238] sm:$0xff] %vm2817, %v2616
  %2890 = vst.msk [vmem:[%s5 + $0x240] sm:$0xff] %vm2817, %v2617
  %2891 = vst.msk [vmem:[%s5 + $0x248] sm:$0xff] %vm2817, %v2618
  %2892 = vst.msk [vmem:[%s5 + $0x250] sm:$0xff] %vm2817, %v2619
  %2893 = vst.msk [vmem:[%s5 + $0x258] sm:$0xff] %vm2817, %v2620
  %2894 = vst.msk [vmem:[%s5 + $0x260] sm:$0xff] %vm2817, %v2621
  %2895 = vst.msk [vmem:[%s5 + $0x268] sm:$0xff] %vm2817, %v2622
  %2896 = vst.msk [vmem:[%s5 + $0x270] sm:$0xff] %vm2817, %v2623
  %2897 = vst.msk [vmem:[%s5 + $0x278] sm:$0xff] %vm2817, %v2624
  %2898 = vst.msk [vmem:[%s5 + $0x280] sm:$0xff] %vm2817, %v2641
  %2899 = vst.msk [vmem:[%s5 + $0x288] sm:$0xff] %vm2817, %v2642
  %2900 = vst.msk [vmem:[%s5 + $0x290] sm:$0xff] %vm2817, %v2643
  %2901 = vst.msk [vmem:[%s5 + $0x298] sm:$0xff] %vm2817, %v2644
  %2902 = vst.msk [vmem:[%s5 + $0x2a0] sm:$0xff] %vm2817, %v2645
  %2903 = vst.msk [vmem:[%s5 + $0x2a8] sm:$0xff] %vm2817, %v2646
  %2904 = vst.msk [vmem:[%s5 + $0x2b0] sm:$0xff] %vm2817, %v2647
  %2905 = vst.msk [vmem:[%s5 + $0x2b8] sm:$0xff] %vm2817, %v2648
  %2906 = vst.msk [vmem:[%s5 + $0x2c0] sm:$0xff] %vm2817, %v2649
  %2907 = vst.msk [vmem:[%s5 + $0x2c8] sm:$0xff] %vm2817, %v2650
  %2908 = vst.msk [vmem:[%s5 + $0x2d0] sm:$0xff] %vm2817, %v2651
  %2909 = vst.msk [vmem:[%s5 + $0x2d8] sm:$0xff] %vm2817, %v2652
  %2910 = vst.msk [vmem:[%s5 + $0x2e0] sm:$0xff] %vm2817, %v2653
  %2911 = vst.msk [vmem:[%s5 + $0x2e8] sm:$0xff] %vm2817, %v2654
  %2912 = vst.msk [vmem:[%s5 + $0x2f0] sm:$0xff] %vm2817, %v2655
  %2913 = vst.msk [vmem:[%s5 + $0x2f8] sm:$0xff] %vm2817, %v2656
  %2914 = vst.msk [vmem:[%s5 + $0x300] sm:$0xff] %vm2817, %v2673
  %2915 = vst.msk [vmem:[%s5 + $0x308] sm:$0xff] %vm2817, %v2674
  %2916 = vst.msk [vmem:[%s5 + $0x310] sm:$0xff] %vm2817, %v2675
  %2917 = vst.msk [vmem:[%s5 + $0x318] sm:$0xff] %vm2817, %v2676
  %2918 = vst.msk [vmem:[%s5 + $0x320] sm:$0xff] %vm2817, %v2677
  %2919 = vst.msk [vmem:[%s5 + $0x328] sm:$0xff] %vm2817, %v2678
  %2920 = vst.msk [vmem:[%s5 + $0x330] sm:$0xff] %vm2817, %v2679
  %2921 = vst.msk [vmem:[%s5 + $0x338] sm:$0xff] %vm2817, %v2680
  %2922 = vst.msk [vmem:[%s5 + $0x340] sm:$0xff] %vm2817, %v2681
  %2923 = vst.msk [vmem:[%s5 + $0x348] sm:$0xff] %vm2817, %v2682
  %2924 = vst.msk [vmem:[%s5 + $0x350] sm:$0xff] %vm2817, %v2683
  %2925 = vst.msk [vmem:[%s5 + $0x358] sm:$0xff] %vm2817, %v2684
  %2926 = vst.msk [vmem:[%s5 + $0x360] sm:$0xff] %vm2817, %v2685
  %2927 = vst.msk [vmem:[%s5 + $0x368] sm:$0xff] %vm2817, %v2686
  %2928 = vst.msk [vmem:[%s5 + $0x370] sm:$0xff] %vm2817, %v2687
  %2929 = vst.msk [vmem:[%s5 + $0x378] sm:$0xff] %vm2817, %v2688
  %2930 = vst.msk [vmem:[%s5 + $0x380] sm:$0xff] %vm2817, %v2705
  %2931 = vst.msk [vmem:[%s5 + $0x388] sm:$0xff] %vm2817, %v2706
  %2932 = vst.msk [vmem:[%s5 + $0x390] sm:$0xff] %vm2817, %v2707
  %2933 = vst.msk [vmem:[%s5 + $0x398] sm:$0xff] %vm2817, %v2708
  %2934 = vst.msk [vmem:[%s5 + $0x3a0] sm:$0xff] %vm2817, %v2709
  %2935 = vst.msk [vmem:[%s5 + $0x3a8] sm:$0xff] %vm2817, %v2710
  %2936 = vst.msk [vmem:[%s5 + $0x3b0] sm:$0xff] %vm2817, %v2711
  %2937 = vst.msk [vmem:[%s5 + $0x3b8] sm:$0xff] %vm2817, %v2712
  %2938 = vst.msk [vmem:[%s5 + $0x3c0] sm:$0xff] %vm2817, %v2713
  %2939 = vst.msk [vmem:[%s5 + $0x3c8] sm:$0xff] %vm2817, %v2714
  %2940 = vst.msk [vmem:[%s5 + $0x3d0] sm:$0xff] %vm2817, %v2715
  %2941 = vst.msk [vmem:[%s5 + $0x3d8] sm:$0xff] %vm2817, %v2716
  %2942 = vst.msk [vmem:[%s5 + $0x3e0] sm:$0xff] %vm2817, %v2717
  %2943 = vst.msk [vmem:[%s5 + $0x3e8] sm:$0xff] %vm2817, %v2718
  %2944 = vst.msk [vmem:[%s5 + $0x3f0] sm:$0xff] %vm2817, %v2719
  %2945 = vst.msk [vmem:[%s5 + $0x3f8] sm:$0xff] %vm2817, %v2720
  %2946 = vst.msk [vmem:[%s5 + $0x400] sm:$0xff] %vm2817, %v2737
  %2947 = vst.msk [vmem:[%s5 + $0x408] sm:$0xff] %vm2817, %v2738
  %2948 = vst.msk [vmem:[%s5 + $0x410] sm:$0xff] %vm2817, %v2739
  %2949 = vst.msk [vmem:[%s5 + $0x418] sm:$0xff] %vm2817, %v2740
  %2950 = vst.msk [vmem:[%s5 + $0x420] sm:$0xff] %vm2817, %v2741
  %2951 = vst.msk [vmem:[%s5 + $0x428] sm:$0xff] %vm2817, %v2742
  %2952 = vst.msk [vmem:[%s5 + $0x430] sm:$0xff] %vm2817, %v2743
  %2953 = vst.msk [vmem:[%s5 + $0x438] sm:$0xff] %vm2817, %v2744
  %2954 = vst.msk [vmem:[%s5 + $0x440] sm:$0xff] %vm2817, %v2745
  %2955 = vst.msk [vmem:[%s5 + $0x448] sm:$0xff] %vm2817, %v2746
  %2956 = vst.msk [vmem:[%s5 + $0x450] sm:$0xff] %vm2817, %v2747
  %2957 = vst.msk [vmem:[%s5 + $0x458] sm:$0xff] %vm2817, %v2748
  %2958 = vst.msk [vmem:[%s5 + $0x460] sm:$0xff] %vm2817, %v2749
  %2959 = vst.msk [vmem:[%s5 + $0x468] sm:$0xff] %vm2817, %v2750
  %2960 = vst.msk [vmem:[%s5 + $0x470] sm:$0xff] %vm2817, %v2751
  %2961 = vst.msk [vmem:[%s5 + $0x478] sm:$0xff] %vm2817, %v2752
  %2962 = vst.msk [vmem:[%s5 + $0x480] sm:$0xff] %vm2817, %v2769
  %2963 = vst.msk [vmem:[%s5 + $0x488] sm:$0xff] %vm2817, %v2770
  %2964 = vst.msk [vmem:[%s5 + $0x490] sm:$0xff] %vm2817, %v2771
  %2965 = vst.msk [vmem:[%s5 + $0x498] sm:$0xff] %vm2817, %v2772
  %2966 = vst.msk [vmem:[%s5 + $0x4a0] sm:$0xff] %vm2817, %v2773
  %2967 = vst.msk [vmem:[%s5 + $0x4a8] sm:$0xff] %vm2817, %v2774
  %2968 = vst.msk [vmem:[%s5 + $0x4b0] sm:$0xff] %vm2817, %v2775
  %2969 = vst.msk [vmem:[%s5 + $0x4b8] sm:$0xff] %vm2817, %v2776
  %2970 = vst.msk [vmem:[%s5 + $0x4c0] sm:$0xff] %vm2817, %v2777
  %2971 = vst.msk [vmem:[%s5 + $0x4c8] sm:$0xff] %vm2817, %v2778
  %2972 = vst.msk [vmem:[%s5 + $0x4d0] sm:$0xff] %vm2817, %v2779
  %2973 = vst.msk [vmem:[%s5 + $0x4d8] sm:$0xff] %vm2817, %v2780
  %2974 = vst.msk [vmem:[%s5 + $0x4e0] sm:$0xff] %vm2817, %v2781
  %2975 = vst.msk [vmem:[%s5 + $0x4e8] sm:$0xff] %vm2817, %v2782
  %2976 = vst.msk [vmem:[%s5 + $0x4f0] sm:$0xff] %vm2817, %v2783
  %2977 = vst.msk [vmem:[%s5 + $0x4f8] sm:$0xff] %vm2817, %v2784
  %2978 = vst.msk [vmem:[%s5 + $0x500] sm:$0xff] %vm2817, %v2801
  %2979 = vst.msk [vmem:[%s5 + $0x508] sm:$0xff] %vm2817, %v2802
  %2980 = vst.msk [vmem:[%s5 + $0x510] sm:$0xff] %vm2817, %v2803
  %2981 = vst.msk [vmem:[%s5 + $0x518] sm:$0xff] %vm2817, %v2804
  %2982 = vst.msk [vmem:[%s5 + $0x520] sm:$0xff] %vm2817, %v2805
  %2983 = vst.msk [vmem:[%s5 + $0x528] sm:$0xff] %vm2817, %v2806
  %2984 = vst.msk [vmem:[%s5 + $0x530] sm:$0xff] %vm2817, %v2807
  %2985 = vst.msk [vmem:[%s5 + $0x538] sm:$0xff] %vm2817, %v2808
  %2986 = vst.msk [vmem:[%s5 + $0x540] sm:$0xff] %vm2817, %v2809
  %2987 = vst.msk [vmem:[%s5 + $0x548] sm:$0xff] %vm2817, %v2810
  %2988 = vst.msk [vmem:[%s5 + $0x550] sm:$0xff] %vm2817, %v2811
  %2989 = vst.msk [vmem:[%s5 + $0x558] sm:$0xff] %vm2817, %v2812
  %2990 = vst.msk [vmem:[%s5 + $0x560] sm:$0xff] %vm2817, %v2813
  %2991 = vst.msk [vmem:[%s5 + $0x568] sm:$0xff] %vm2817, %v2814
  // Predicated region
  $region22: #{fused_add_conv_bn.1} parent=0 // pred_check
    _
  $region23: #{fused_add_conv_bn.1} parent=0 // pred_check_branch
    %2993 = sbr.rel (0) target = $region25
  $region24: #{fused_add_conv_bn.1} parent=0 // pred_region
    _
  $region25: #{fused_add_conv_bn.1} parent=0 // pred_fallthru
    _
  // Predicated region
  $region26: #{fused_add_conv_bn.1} parent=0 // pred_check
    _
  $region27: #{fused_add_conv_bn.1} parent=0 // pred_check_branch
    %2995 = sbr.rel (0) target = $region29
  $region28: #{fused_add_conv_bn.1} parent=0 // pred_region
    _
  $region29: #{fused_add_conv_bn.1} parent=0 // pred_fallthru
    _

</llo_original>
